<compile_context>
chip_gen: v7x
topology: tpu7x:2x2x1
jax: 0.10.0
libtpu: 0.0.40
codegen_flags: <defaults>
</compile_context>

<pallas_src>
import functools

import jax
import jax.numpy as jnp
import numpy as np
from jax.experimental import pallas as pl
from jax.experimental.pallas import tpu as pltpu


def _conv_bn_swish_kernel(x_ref, w_ref, shift_ref, o_ref, *,
                          K, stride, band_h, Wo, Cout):
    """One (batch element, output-row band) per grid step.

    x_ref:     (Cin, band_in, Wp)   f32 padded input rows for this band (NCHW)
    w_ref:     (Cout_p, K*K*Cin)    f32 BN-scale-folded weights (Cout padded to x8)
    shift_ref: (Cout, 1)            f32 folded BN shift (beta - mean*scale)
    o_ref:     (Cout, band_h*Wo)    output band, channel-major, lane dim = band_h*Wo
    """
    cin = x_ref.shape[0]
    xb = x_ref[...]                                      # (Cin, band_in, Wp)

    # Channel-major im2col: K*K shifted/strided taps stacked along the contraction
    # (sublane/major) axis; the flattened spatial extent band_h*Wo lives in the
    # lane dim, so every intermediate and the matmul RHS is lane-dense even for
    # tiny Cin (the previous Cin-as-lane layout was ~4/128 occupied at Cin=4).
    taps = []
    for kh in range(K):
        for kw in range(K):
            taps.append(jax.lax.slice(
                xb,
                (0, kh, kw),
                (cin, kh + (band_h - 1) * stride + 1, kw + (Wo - 1) * stride + 1),
                (1, stride, stride)))                    # (Cin, band_h, Wo)
    band_m = band_h * Wo
    patches = jnp.concatenate(taps, axis=0).reshape(K * K * cin, band_m)

    # One fat MXU matmul: (Cout_p, KKC) x (KKC, band_m) -> f32 (Cout_p, band_m).
    # Accumulator is already channel-major -> no XLU transpose before the store.
    acc = jnp.dot(w_ref[...], patches, preferred_element_type=jnp.float32)

    # BN shift (scale already folded into the weights) + Swish epilogue, then a
    # lane-dense store (band_m is a multiple of 128 unless a single band).
    z = acc[:Cout, :] + shift_ref[...]                   # broadcast (Cout, 1)
    o_ref[...] = (z * jax.nn.sigmoid(z)).astype(o_ref.dtype)


def _vmem_capacity_bytes(default=64 << 20):
    """Generation-aware VMEM capacity; v7x-safe 64 MiB fallback off-TPU."""
    try:
        cap = int(pltpu.get_tpu_info().vmem_capacity_bytes)
        return max(cap, 16 << 20)
    except Exception:
        return default


def _band_workset_bytes(band_h, *, Cin, Wp, Wo, Cout, Cout_p, KKC, K, stride):
    """Rough per-step VMEM working set for a given band height (f32)."""
    band_in = (band_h - 1) * stride + K
    band_m = band_h * Wo
    return 4 * (2 * Cin * band_in * Wp      # input band block, double-buffered
                + 2 * Cout * band_m         # output band block, double-buffered
                + 2 * Cout_p * KKC          # weights (default double buffer)
                + 3 * KKC * band_m          # taps + concat + (KKC, band_m) patches
                + 2 * Cout_p * band_m)      # accumulator + epilogue temporaries


def _pick_band_h(Ho, Wo, *, vmem_budget, min_bands, work_fn):
    """Pick the output-row band height.

    Constraints: output lane dim band_h*Wo must be a multiple of 128 (unless one
    band covers everything); the working set must fit vmem_budget; prefer at least
    min_bands bands (keeps both v7x TensorCores busy when N == 1).  band_h does
    NOT need to divide Ho (ragged tail is padded and cropped in the wrapper).
    """
    cands = [h for h in range(1, Ho + 1) if (h * Wo) % 128 == 0]
    if not cands:
        cands = [Ho]                                  # single full band fallback
    fitting = [h for h in cands if work_fn(h) <= vmem_budget]
    pool = fitting if fitting else [min(cands)]
    multi = [h for h in pool if -(-Ho // h) >= min_bands]
    return max(multi) if multi else max(pool)


def conv_block_forward(x_nchw, weight_oihw, gamma, beta, running_mean,
                       running_var, *, padding=0, stride=1, eps=1e-5):
    """ConvBlock forward: Conv2d(bias=False) + BatchNorm2d(eval) + Swish.

    x_nchw:      (N, Cin, H, W)
    weight_oihw: (Cout, Cin, K, K)
    returns:     (N, Cout, Ho, Wo)
    """
    N, Cin, H, W = x_nchw.shape
    Cout, _, K, _ = weight_oihw.shape
    Ho = (H + 2 * padding - K) // stride + 1
    Wo = (W + 2 * padding - K) // stride + 1
    Hp, Wp = H + 2 * padding, W + 2 * padding
    Cout_p = -(-Cout // 8) * 8                 # sublane-align only (channel-major)
    KKC = K * K * Cin

    # Inference-mode BN folding: scale into weights, shift stays additive.
    scale = (gamma.astype(jnp.float32)
             / jnp.sqrt(running_var.astype(jnp.float32) + eps))          # (Cout,)
    shift = (beta.astype(jnp.float32)
             - running_mean.astype(jnp.float32) * scale).reshape(Cout, 1)

    # Weights: OIHW -> (Cout, K, K, Cin) -> (Cout, KKC); fold scale; pad Cout -> x8.
    w2d = jnp.transpose(weight_oihw.astype(jnp.float32), (0, 2, 3, 1)).reshape(Cout, KKC)
    w2d = w2d * scale[:, None]
    w2d = jnp.pad(w2d, ((0, Cout_p - Cout), (0, 0)))

    # Band selection, sized against the actual per-step working set and VMEM.
    vmem_cap = _vmem_capacity_bytes()
    work_fn = functools.partial(_band_workset_bytes, Cin=Cin, Wp=Wp, Wo=Wo,
                                Cout=Cout, Cout_p=Cout_p, KKC=KKC, K=K,
                                stride=stride)
    min_bands = 2 if N == 1 else 1             # v7x: give both TCs work for N == 1
    band_h = _pick_band_h(Ho, Wo, vmem_budget=(vmem_cap * 3) // 5,
                          min_bands=min_bands, work_fn=work_fn)
    band_in = (band_h - 1) * stride + K
    num_bands = -(-Ho // band_h)               # ragged tail allowed
    Ho_pad = num_bands * band_h
    band_m = band_h * Wo

    # Spatial zero-pad (plus extra bottom rows so the ragged tail band's input
    # window exists), then gather each band's rows so the kernel stages only
    # band_in rows per step instead of the whole image.
    rows_needed = (num_bands - 1) * band_h * stride + band_in
    extra_rows = max(0, rows_needed - Hp)
    x_pad = jnp.pad(x_nchw.astype(jnp.float32),
                    ((0, 0), (0, 0),
                     (padding, padding + extra_rows), (padding, padding)))
    row_idx = (jnp.arange(num_bands)[:, None] * band_h * stride
               + jnp.arange(band_in)[None, :])                 # (num_bands, band_in)
    x_bands = x_pad[:, :, row_idx, :]          # (N, Cin, num_bands, band_in, Wp)

    est = work_fn(band_h)
    vmem_limit = int(min(max(est + (2 << 20), 8 << 20), (vmem_cap * 7) // 8))

    kernel = functools.partial(_conv_bn_swish_kernel, K=K, stride=stride,
                               band_h=band_h, Wo=Wo, Cout=Cout)

    out = pl.pallas_call(
        kernel,
        out_shape=jax.ShapeDtypeStruct((N, Cout, Ho_pad * Wo), x_nchw.dtype),
        grid_spec=pltpu.PrefetchScalarGridSpec(
            num_scalar_prefetch=0,
            grid=(N, num_bands),
            in_specs=[
                # one band of padded input rows per step (NOT the whole image)
                pl.BlockSpec((None, Cin, None, band_in, Wp),
                             lambda n, b: (n, 0, b, 0, 0)),
                # grid-invariant folded weights and BN shift
                pl.BlockSpec((Cout_p, KKC), lambda n, b: (0, 0)),
                pl.BlockSpec((Cout, 1), lambda n, b: (0, 0)),
            ],
            out_specs=pl.BlockSpec((None, Cout, band_m), lambda n, b: (n, 0, b)),
        ),
        compiler_params=pltpu.CompilerParams(
            dimension_semantics=("parallel", "parallel"),
            vmem_limit_bytes=vmem_limit),
    )(x_bands, w2d, shift)

    # NC(HW) -> NCHW is a free minor-dim split; crop the ragged-tail padding rows.
    return out.reshape(N, Cout, Ho_pad, Wo)[:, :, :Ho, :]


def _reference_forward(x_nchw, weight_oihw, gamma, beta, mean, var,
                       *, padding, stride, eps=1e-5):
    """Plain-JAX f32 reference mirroring the kernel math."""
    scale = gamma / jnp.sqrt(var + eps)
    shift = beta - mean * scale
    w_folded = (weight_oihw * scale[:, None, None, None]).astype(jnp.float32)
    conv = jax.lax.conv_general_dilated(
        x_nchw.astype(jnp.float32), w_folded,
        window_strides=(stride, stride),
        padding=((padding, padding), (padding, padding)),
        dimension_numbers=("NCHW", "OIHW", "NCHW"))
    z = conv + shift[None, :, None, None]
    return z * jax.nn.sigmoid(z)


if __name__ == "__main__":
    # ConvBlock(in_channel=4, out_channel=8, kernel_size=3, padding=1, stride=1)
    N, Cin, H, W = 2, 4, 16, 16
    Cout, K, padding, stride = 8, 3, 1, 1

    key = jax.random.PRNGKey(0)
    kx, kw, kg, kb = jax.random.split(key, 4)

    x = jax.random.normal(kx, (N, Cin, H, W), dtype=jnp.float32)
    fan_in = Cin * K * K
    bound = 1.0 / np.sqrt(fan_in)
    weight = jax.random.uniform(
        kw, (Cout, Cin, K, K), minval=-bound, maxval=bound, dtype=jnp.float32)
    gamma = jax.random.uniform(kg, (Cout,), minval=0.5, maxval=1.5,
                               dtype=jnp.float32)
    beta = jax.random.uniform(kb, (Cout,), minval=-0.5, maxval=0.5,
                              dtype=jnp.float32)
    running_mean = jnp.zeros((Cout,), jnp.float32)   # PyTorch BN default init
    running_var = jnp.ones((Cout,), jnp.float32)

    out = conv_block_forward(
        x, weight, gamma, beta, running_mean, running_var,
        padding=padding, stride=stride)
    out = jax.block_until_ready(out)

    ref = _reference_forward(
        x, weight, gamma, beta, running_mean, running_var,
        padding=padding, stride=stride)
    ref = jax.block_until_ready(ref)

    assert out.shape == (N, Cout, H, W), out.shape
    # f32 everywhere; tolerance allows for MXU default-precision accumulation
    # differences on real TPUs (interpret/CPU matches to ~1e-6).
    np.testing.assert_allclose(np.asarray(out), np.asarray(ref),
                               rtol=5e-3, atol=5e-3)
    print("KERNEL_OK")
</pallas_src>

<mosaic_0001>
module attributes {stable_mosaic.version = 11 : i64} {
  func.func @_conv_bn_swish_kernel(%arg0: i32, %arg1: i32, %arg2: memref<1x4x1x18x18xf32, #tpu.memory_space<vmem>>, %arg3: memref<8x36xf32, #tpu.memory_space<vmem>>, %arg4: memref<8x1xf32, #tpu.memory_space<vmem>>, %arg5: memref<1x8x256xf32, #tpu.memory_space<vmem>>) attributes {dimension_semantics = [#tpu.dimension_semantics<parallel>, #tpu.dimension_semantics<parallel>], iteration_bounds = array<i64: 2, 1>, scalar_prefetch = 0 : i64, scratch_operands = 0 : i64, tpu.core_type = #tpu.core_type<tc>, window_params = [{transform_indices = @transform_0, window_bounds = array<i64: 1, 4, 1, 18, 18>}, {pipeline_mode = #tpu.pipeline_mode<synchronous>, transform_indices = @transform_1, window_bounds = array<i64: 8, 36>}, {pipeline_mode = #tpu.pipeline_mode<synchronous>, transform_indices = @transform_2, window_bounds = array<i64: 8, 1>}, {transform_indices = @transform_3, window_bounds = array<i64: 1, 8, 256>}]} {
    %c0 = arith.constant 0 : index
    %c0_0 = arith.constant 0 : index
    %c0_1 = arith.constant 0 : index
    %c0_2 = arith.constant 0 : index
    %c0_3 = arith.constant 0 : index
    %0 = vector.load %arg2[%c0, %c0_0, %c0_1, %c0_2, %c0_3] : memref<1x4x1x18x18xf32, #tpu.memory_space<vmem>>, vector<1x4x1x18x18xf32>
    %1 = vector.shape_cast %0 : vector<1x4x1x18x18xf32> to vector<4x18x18xf32>
    %2 = vector.extract_strided_slice %1 {offsets = [0, 0, 0], sizes = [4, 16, 16], strides = [1, 1, 1]} : vector<4x18x18xf32> to vector<4x16x16xf32>
    %3 = vector.extract_strided_slice %1 {offsets = [0, 0, 1], sizes = [4, 16, 16], strides = [1, 1, 1]} : vector<4x18x18xf32> to vector<4x16x16xf32>
    %4 = vector.extract_strided_slice %1 {offsets = [0, 0, 2], sizes = [4, 16, 16], strides = [1, 1, 1]} : vector<4x18x18xf32> to vector<4x16x16xf32>
    %5 = vector.extract_strided_slice %1 {offsets = [0, 1, 0], sizes = [4, 16, 16], strides = [1, 1, 1]} : vector<4x18x18xf32> to vector<4x16x16xf32>
    %6 = vector.extract_strided_slice %1 {offsets = [0, 1, 1], sizes = [4, 16, 16], strides = [1, 1, 1]} : vector<4x18x18xf32> to vector<4x16x16xf32>
    %7 = vector.extract_strided_slice %1 {offsets = [0, 1, 2], sizes = [4, 16, 16], strides = [1, 1, 1]} : vector<4x18x18xf32> to vector<4x16x16xf32>
    %8 = vector.extract_strided_slice %1 {offsets = [0, 2, 0], sizes = [4, 16, 16], strides = [1, 1, 1]} : vector<4x18x18xf32> to vector<4x16x16xf32>
    %9 = vector.extract_strided_slice %1 {offsets = [0, 2, 1], sizes = [4, 16, 16], strides = [1, 1, 1]} : vector<4x18x18xf32> to vector<4x16x16xf32>
    %10 = vector.extract_strided_slice %1 {offsets = [0, 2, 2], sizes = [4, 16, 16], strides = [1, 1, 1]} : vector<4x18x18xf32> to vector<4x16x16xf32>
    %11 = tpu.concatenate %2, %3, %4, %5, %6, %7, %8, %9, %10 in 0 : vector<4x16x16xf32>, vector<4x16x16xf32>, vector<4x16x16xf32>, vector<4x16x16xf32>, vector<4x16x16xf32>, vector<4x16x16xf32>, vector<4x16x16xf32>, vector<4x16x16xf32>, vector<4x16x16xf32> -> vector<36x16x16xf32>
    %12 = vector.shape_cast %11 : vector<36x16x16xf32> to vector<36x256xf32>
    %c0_4 = arith.constant 0 : index
    %c0_5 = arith.constant 0 : index
    %13 = vector.load %arg3[%c0_4, %c0_5] : memref<8x36xf32, #tpu.memory_space<vmem>>, vector<8x36xf32>
    %cst = arith.constant dense<0.000000e+00> : vector<8x256xf32>
    %14 = tpu.matmul %13, %12, %cst {dimension_numbers = #tpu.dot_dimension_numbers<[1], [0], [0], [1], [0, 0, 1, 1], [], []>} : vector<8x36xf32>, vector<36x256xf32>, vector<8x256xf32> -> vector<8x256xf32>
    %c0_6 = arith.constant 0 : index
    %c0_7 = arith.constant 0 : index
    %15 = vector.load %arg4[%c0_6, %c0_7] : memref<8x1xf32, #tpu.memory_space<vmem>>, vector<8x1xf32>
    %16 = vector.broadcast %15 : vector<8x1xf32> to vector<8x256xf32>
    %17 = arith.addf %14, %16 : vector<8x256xf32>
    %18 = arith.negf %17 : vector<8x256xf32>
    %19 = math.exp %18 : vector<8x256xf32>
    %cst_8 = arith.constant 1.000000e+00 : f32
    %20 = vector.broadcast %cst_8 : f32 to vector<8x256xf32>
    %21 = arith.addf %20, %19 : vector<8x256xf32>
    %22 = arith.divf %20, %21 : vector<8x256xf32>
    %23 = arith.mulf %17, %22 : vector<8x256xf32>
    %c0_9 = arith.constant 0 : index
    %c0_10 = arith.constant 0 : index
    %c0_11 = arith.constant 0 : index
    %24 = vector.load %arg5[%c0_9, %c0_10, %c0_11] : memref<1x8x256xf32, #tpu.memory_space<vmem>>, vector<1x8x256xf32>
    %25 = vector.shape_cast %24 : vector<1x8x256xf32> to vector<8x256xf32>
    %26 = vector.shape_cast %23 : vector<8x256xf32> to vector<1x8x256xf32>
    tpu.vector_store %arg5[%c0_9, %c0_10, %c0_11], %26 {strides = array<i32>} : memref<1x8x256xf32, #tpu.memory_space<vmem>>, vector<1x8x256xf32>,
    return
  }
  func.func @transform_0(%arg0: i32, %arg1: i32) -> (i32, i32, i32, i32, i32) {
    %c0_i32 = arith.constant 0 : i32
    %c0_i32_0 = arith.constant 0 : i32
    %c0_i32_1 = arith.constant 0 : i32
    %c0_i32_2 = arith.constant 0 : i32
    return %arg0, %c0_i32, %arg1, %c0_i32_0, %c0_i32_1 : i32, i32, i32, i32, i32
  }
  func.func @transform_1(%arg0: i32, %arg1: i32) -> (i32, i32) {
    %c0_i32 = arith.constant 0 : i32
    %c0_i32_0 = arith.constant 0 : i32
    %c0_i32_1 = arith.constant 0 : i32
    return %c0_i32, %c0_i32_0 : i32, i32
  }
  func.func @transform_2(%arg0: i32, %arg1: i32) -> (i32, i32) {
    %c0_i32 = arith.constant 0 : i32
    %c0_i32_0 = arith.constant 0 : i32
    %c0_i32_1 = arith.constant 0 : i32
    return %c0_i32, %c0_i32_0 : i32, i32
  }
  func.func @transform_3(%arg0: i32, %arg1: i32) -> (i32, i32, i32) {
    %c0_i32 = arith.constant 0 : i32
    %c0_i32_0 = arith.constant 0 : i32
    return %arg0, %c0_i32, %arg1 : i32, i32, i32
  }
}

</mosaic_0001>

<llo_original>
// kernel: tpu_custom_call.1
$region0: #{tpu_custom_call.1}
  #allocation0 [shape = 'u32[]', space=smem, size = 0x4, offset = 0x4, fixed_abs, tag = 'smem constant byte address 0x4 - core index']
  #allocation1 [shape = 'u32[144,128]{1,0:T(1,128)}', space=vmem, size = 0x12000, scoped, tag = 'internal scratch']
  %s0 = inlined_call_operand.vmem [shape: f32[2,4,1,18,18], index: 0, kind: input, shape index: {}]
  %s1 = inlined_call_operand.vmem [shape: f32[8,36], index: 1, kind: input, shape index: {}]
  %s2 = inlined_call_operand.vmem [shape: f32[8,1], index: 2, kind: input, shape index: {}]
  %s3 = inlined_call_operand.hbm [shape: f32[2,8,256], index: 3, kind: output, shape index: {}]
  %s4 = sld [smem:[#allocation0]]
  $region45: #{tpu_custom_call.1} parent=0
    _
  %s6 = ssub.s32 1, %s4
  %s7 = scalar_select 0, %s6, %s4
  $region1: #{tpu_custom_call.1} parent=0
    #allocation2 [shape = 'u8[16384]{0}', space=vmem, size = 0x4000, scoped, tag = 'output window, operand 0']
    #allocation3 [shape = 's32[2]{0}', space=sflag, size = 0x8, scoped, tag = 'scoped memory for tpu_custom_call.1']
    %8 = vsyncpa [#allocation3], 0
    %s9 = scalar_lea.sflag [#allocation3], 1
    %10 = vsyncpa %s9, 0
    loop: start=0, step=1, limit=4
    $region2: #{tpu_custom_call.1} parent=1 // loop_pre_header
      _
    $region3: #{tpu_custom_call.1} parent=1 // loop_header
      %s12 = sphi 0, %s16
      %p13 = scmp.ge.s32.totalorder %s12, 4
      %s19 = sphi 0, %s31
      %s20 = sphi 0, %s27
      %s21 = sphi 0, %s19
      %s22 = sphi 0, %s20
      %s23 = sphi 0, %s21
      %s24 = sphi 0, %s22
      %s36 = sphi 0, %s38
      %s39 = sphi 0, %s36
      %s40 = sphi 0, %s39
      %s56 = sphi 0, %s40
      %s60 = sphi 0, %s60
      %s62 = sphi 0, %s60
      %s63 = sphi 0, %s62
      %s77 = sphi 0, %s63
      %s81 = sphi 0, %s81
      %s83 = sphi 0, %s81
      %s84 = sphi 0, %s83
      %s98 = sphi 0, %s84
      %s106 = sphi 0, %s108
      %s109 = sphi 0, %s106
      %s110 = sphi 0, %s109
      %s126 = sphi 0, %s110
    $region4: #{tpu_custom_call.1} parent=1 // loop_header_branch
      %15 = sbr.rel (%p13) target = $region8
    $region5: #{tpu_custom_call.1} parent=1 // loop_body
      %s17 = ssub.s32 %s12, 1
      %s18 = ssub.s32 %s12, 2
      %s25 = sadd.s32 1, %s20
      %p26 = scmp.ge.s32.totalorder %s25, 1
      %s27 = scalar_select %p26, 0, %s25
      %s28 = sadd.s32 1, %s19
      %s29 = scalar_select %p26, %s28, %s19
      %p30 = scmp.ge.s32.totalorder %s29, 2
      %s31 = scalar_select %p30, 0, %s29
      %s32 = ssub.s32 %s19, %s31
      %s33 = ssub.s32 %s20, %s27
      %s34 = sor.u32 %s32, %s33
      %p35 = scmp.eq.s32.totalorder %s34, 0
      %s37 = sadd.s32 %s36, 1
      %s38 = scalar_select %p35, %s36, %s37
      %p41 = pneg %p35
      %p42 = scmp.eq.s32.totalorder %s12, 1
      %p43 = por %p41, %p42
      %p44 = scmp.ne.s32.totalorder %s36, %s39
      %p45 = scmp.eq.s32.totalorder %s12, 0
      %p46 = por %p44, %p45
      %p47 = scmp.ne.s32.totalorder %s36, %s39
      %p48 = scmp.eq.s32.totalorder %s17, 1
      %p49 = por %p47, %p48
      %p50 = scmp.ne.s32.totalorder %s39, %s40
      %p51 = scmp.eq.s32.totalorder %s17, 0
      %p52 = por %p50, %p51
      %p53 = scmp.ne.s32.totalorder %s39, %s40
      %p54 = scmp.eq.s32.totalorder %s18, 1
      %p55 = por %p53, %p54
      %p57 = scmp.ne.s32.totalorder %s40, %s56
      %p58 = scmp.eq.s32.totalorder %s18, 0
      %p59 = por %p57, %p58
      %s61 = sadd.s32 %s60, 1
      %p64 = scmp.eq.s32.totalorder %s12, 1
      %p65 = scmp.ne.s32.totalorder %s60, %s62
      %p66 = scmp.eq.s32.totalorder %s12, 0
      %p67 = por %p65, %p66
      %p68 = scmp.ne.s32.totalorder %s60, %s62
      %p69 = scmp.eq.s32.totalorder %s17, 1
      %p70 = por %p68, %p69
      %p71 = scmp.ne.s32.totalorder %s62, %s63
      %p72 = scmp.eq.s32.totalorder %s17, 0
      %p73 = por %p71, %p72
      %p74 = scmp.ne.s32.totalorder %s62, %s63
      %p75 = scmp.eq.s32.totalorder %s18, 1
      %p76 = por %p74, %p75
      %p78 = scmp.ne.s32.totalorder %s63, %s77
      %p79 = scmp.eq.s32.totalorder %s18, 0
      %p80 = por %p78, %p79
      %s82 = sadd.s32 %s81, 1
      %p85 = scmp.eq.s32.totalorder %s12, 1
      %p86 = scmp.ne.s32.totalorder %s81, %s83
      %p87 = scmp.eq.s32.totalorder %s12, 0
      %p88 = por %p86, %p87
      %p89 = scmp.ne.s32.totalorder %s81, %s83
      %p90 = scmp.eq.s32.totalorder %s17, 1
      %p91 = por %p89, %p90
      %p92 = scmp.ne.s32.totalorder %s83, %s84
      %p93 = scmp.eq.s32.totalorder %s17, 0
      %p94 = por %p92, %p93
      %p95 = scmp.ne.s32.totalorder %s83, %s84
      %p96 = scmp.eq.s32.totalorder %s18, 1
      %p97 = por %p95, %p96
      %p99 = scmp.ne.s32.totalorder %s84, %s98
      %p100 = scmp.eq.s32.totalorder %s18, 0
      %p101 = por %p99, %p100
      %s102 = ssub.s32 %s19, %s31
      %s103 = ssub.s32 %s20, %s27
      %s104 = sor.u32 %s102, %s103
      %p105 = scmp.eq.s32.totalorder %s104, 0
      %s107 = sadd.s32 %s106, 1
      %s108 = scalar_select %p105, %s106, %s107
      %p111 = pneg %p105
      %p112 = scmp.eq.s32.totalorder %s12, 1
      %p113 = por %p111, %p112
      %p114 = scmp.ne.s32.totalorder %s106, %s109
      %p115 = scmp.eq.s32.totalorder %s12, 0
      %p116 = por %p114, %p115
      %p117 = scmp.ne.s32.totalorder %s106, %s109
      %p118 = scmp.eq.s32.totalorder %s17, 1
      %p119 = por %p117, %p118
      %p120 = scmp.ne.s32.totalorder %s109, %s110
      %p121 = scmp.eq.s32.totalorder %s17, 0
      %p122 = por %p120, %p121
      %p123 = scmp.ne.s32.totalorder %s109, %s110
      %p124 = scmp.eq.s32.totalorder %s18, 1
      %p125 = por %p123, %p124
      %p127 = scmp.ne.s32.totalorder %s110, %s126
      %p128 = scmp.eq.s32.totalorder %s18, 0
      %p129 = por %p127, %p128
      %p130 = scmp.le.s32.totalorder 1, %s12
      %p131 = scmp.lt.s32.totalorder %s12, 3
      %p132 = pnand %p130, %p131
      %p133 = pneg %p132
      // Predicated region
      $region9: #{tpu_custom_call.1} parent=5 // pred_check
        _
      $region10: #{tpu_custom_call.1} parent=5 // pred_check_branch
        %135 = sbr.rel (%p132) target = $region12
      $region11: #{tpu_custom_call.1} parent=5 // pred_region
        %s136 = ssub.s32 %s12, 1
        // Predicated region
        $region13: #{tpu_custom_call.1} parent=11 // pred_check
          %p137 = pneg %p73
        $region14: #{tpu_custom_call.1} parent=11 // pred_check_branch
          %139 = sbr.rel (%p137) target = $region16
        $region15: #{tpu_custom_call.1} parent=11 // pred_region
          _
        $region16: #{tpu_custom_call.1} parent=11 // pred_fallthru
          _
        // Predicated region
        $region17: #{tpu_custom_call.1} parent=11 // pred_check
          %p140 = pneg %p94
        $region18: #{tpu_custom_call.1} parent=11 // pred_check_branch
          %142 = sbr.rel (%p140) target = $region20
        $region19: #{tpu_custom_call.1} parent=11 // pred_region
          _
        $region20: #{tpu_custom_call.1} parent=11 // pred_fallthru
          _
      $region12: #{tpu_custom_call.1} parent=5 // pred_fallthru
        _
      %p143 = scmp.lt.s32.totalorder %s12, 2
      // Predicated region
      $region21: #{tpu_custom_call.1} parent=5 // pred_check
        %p144 = pneg %p143
      $region22: #{tpu_custom_call.1} parent=5 // pred_check_branch
        %146 = sbr.rel (%p144) target = $region24
      $region23: #{tpu_custom_call.1} parent=5 // pred_region
        // Predicated region
        $region25: #{tpu_custom_call.1} parent=23 // pred_check
          %p147 = pneg %p46
        $region26: #{tpu_custom_call.1} parent=23 // pred_check_branch
          %149 = sbr.rel (%p147) target = $region28
        $region27: #{tpu_custom_call.1} parent=23 // pred_region
          %p150 = scmp.lt.s32.totalorder %s19, 1
          %s151 = scalar_select %p150, %s19, 1
          %p152 = scmp.lt.s32.totalorder %s20, 0
          %s153 = scalar_select %p152, %s20, 0
          %s154 = smul.addr %s153, 3
          %s155 = smul.addr %s151, 12
          %s156 = sadd.s32 %s154, %s155
          %s157 = smul.addr %s156, 8
          %s158 = scalar_lea.vmem %s0, %s157
        $region28: #{tpu_custom_call.1} parent=23 // pred_fallthru
          _
      $region24: #{tpu_custom_call.1} parent=5 // pred_fallthru
        _
      %p159 = scmp.le.s32.totalorder 1, %s12
      %p160 = scmp.lt.s32.totalorder %s12, 3
      %p161 = pnand %p159, %p160
      %p162 = pneg %p161
      // Predicated region
      $region29: #{tpu_custom_call.1} parent=5 // pred_check
        _
      $region30: #{tpu_custom_call.1} parent=5 // pred_check_branch
        %164 = sbr.rel (%p161) target = $region32
      $region31: #{tpu_custom_call.1} parent=5 // pred_region
        %s165 = ssub.s32 %s12, 1
        %p166 = scmp.lt.s32.totalorder %s21, 1
        %s167 = scalar_select %p166, %s21, 1
        %p168 = scmp.lt.s32.totalorder %s22, 0
        %s169 = scalar_select %p168, %s22, 0
        %s170 = smul.addr %s169, 3
        %s171 = smul.addr %s167, 12
        %s172 = sadd.s32 %s170, %s171
        %s173 = smul.addr %s172, 8
        %s174 = scalar_lea.vmem %s0, %s173
        %p175 = pneg %p52
        %p176 = pneg %p49
        %p177 = pneg %p73
        %p178 = pneg %p70
        %p179 = pneg %p94
        %p180 = pneg %p91
        %p181 = pneg %p122
        %p182 = pneg %p119
        %s183 = sand.u32 %s109, 1
        %s184 = scalar_lea.sflag [#allocation3], %s183
        %s185 = sand.u32 %s109, 1
        %s186 = smul.addr %s185, 16
        %s187 = scalar_lea.vmem [#allocation2], %s186
        %p188 = scmp.lt.s32.totalorder %s21, 1
        %s189 = scalar_select %p188, %s21, 1
        %p190 = scmp.lt.s32.totalorder %s22, 0
        %s191 = scalar_select %p190, %s22, 0
        %s192 = smul.addr %s191, 3
        %s193 = smul.addr %s189, 12
        %s194 = sadd.s32 %s192, %s193
        %s195 = smul.addr %s194, 8
        %s196 = scalar_lea.vmem %s0, %s195
        %s197 = smul.u32 2, %s22
        %v198 = vld [vmem:[%s196] sm:$0xff]
        %v199 = vld [vmem:[%s196 + $0x8] sm:$0xff]
        %v200 = vld [vmem:[%s196 + $0x10] sm:$0x3]
        %v201 = vld [vmem:[%s196 + $0x18] sm:$0xff]
        %v202 = vld [vmem:[%s196 + $0x20] sm:$0xff]
        %v203 = vld [vmem:[%s196 + $0x28] sm:$0x3]
        %v204 = vld [vmem:[%s196 + $0x30] sm:$0xff]
        %v205 = vld [vmem:[%s196 + $0x38] sm:$0xff]
        %v206 = vld [vmem:[%s196 + $0x40] sm:$0x3]
        %v207 = vld [vmem:[%s196 + $0x48] sm:$0xff]
        %v208 = vld [vmem:[%s196 + $0x50] sm:$0xff]
        %v209 = vld [vmem:[%s196 + $0x58] sm:$0x3]
        %218 = vrot.lane.b32.xlu0 %v198, 127
        %v219 = vpop.permute.xlu0 %218
        %220 = vrot.lane.b32.xlu0 %v199, 127
        %v221 = vpop.permute.xlu0 %220
        %222 = vrot.lane.b32.xlu0 %v201, 127
        %v223 = vpop.permute.xlu0 %222
        %224 = vrot.lane.b32.xlu0 %v202, 127
        %v225 = vpop.permute.xlu0 %224
        %226 = vrot.lane.b32.xlu0 %v204, 127
        %v227 = vpop.permute.xlu0 %226
        %228 = vrot.lane.b32.xlu0 %v205, 127
        %v229 = vpop.permute.xlu0 %228
        %230 = vrot.lane.b32.xlu0 %v207, 127
        %v231 = vpop.permute.xlu0 %230
        %232 = vrot.lane.b32.xlu0 %v208, 127
        %v233 = vpop.permute.xlu0 %232
        %242 = vrot.lane.b32.xlu0 %v198, 126
        %v243 = vpop.permute.xlu0 %242
        %244 = vrot.lane.b32.xlu0 %v199, 126
        %v245 = vpop.permute.xlu0 %244
        %246 = vrot.lane.b32.xlu0 %v201, 126
        %v247 = vpop.permute.xlu0 %246
        %248 = vrot.lane.b32.xlu0 %v202, 126
        %v249 = vpop.permute.xlu0 %248
        %250 = vrot.lane.b32.xlu0 %v204, 126
        %v251 = vpop.permute.xlu0 %250
        %252 = vrot.lane.b32.xlu0 %v205, 126
        %v253 = vpop.permute.xlu0 %252
        %254 = vrot.lane.b32.xlu0 %v207, 126
        %v255 = vpop.permute.xlu0 %254
        %256 = vrot.lane.b32.xlu0 %v208, 126
        %v257 = vpop.permute.xlu0 %256
        %vm270 = vcmask 1046528
        %v271 = vrot.slane %v198, 1
        %v272 = vrot.slane %v199, 1
        %v273 = vsel %vm270, %v271, %v272
        %v274 = vrot.slane %v200, 1
        %v275 = vsel %vm270, %v272, %v274
        %v276 = vrot.slane %v201, 1
        %v277 = vrot.slane %v202, 1
        %v278 = vsel %vm270, %v276, %v277
        %v279 = vrot.slane %v203, 1
        %v280 = vsel %vm270, %v277, %v279
        %v281 = vrot.slane %v204, 1
        %v282 = vrot.slane %v205, 1
        %v283 = vsel %vm270, %v281, %v282
        %v284 = vrot.slane %v206, 1
        %v285 = vsel %vm270, %v282, %v284
        %v286 = vrot.slane %v207, 1
        %v287 = vrot.slane %v208, 1
        %v288 = vsel %vm270, %v286, %v287
        %v289 = vrot.slane %v209, 1
        %v290 = vsel %vm270, %v287, %v289
        %299 = vrot.lane.b32.xlu0 %v273, 127
        %v300 = vpop.permute.xlu0 %299
        %301 = vrot.lane.b32.xlu0 %v275, 127
        %v302 = vpop.permute.xlu0 %301
        %303 = vrot.lane.b32.xlu0 %v278, 127
        %v304 = vpop.permute.xlu0 %303
        %305 = vrot.lane.b32.xlu0 %v280, 127
        %v306 = vpop.permute.xlu0 %305
        %307 = vrot.lane.b32.xlu0 %v283, 127
        %v308 = vpop.permute.xlu0 %307
        %309 = vrot.lane.b32.xlu0 %v285, 127
        %v310 = vpop.permute.xlu0 %309
        %311 = vrot.lane.b32.xlu0 %v288, 127
        %v312 = vpop.permute.xlu0 %311
        %313 = vrot.lane.b32.xlu0 %v290, 127
        %v314 = vpop.permute.xlu0 %313
        %323 = vrot.lane.b32.xlu0 %v273, 126
        %v324 = vpop.permute.xlu0 %323
        %325 = vrot.lane.b32.xlu0 %v275, 126
        %v326 = vpop.permute.xlu0 %325
        %327 = vrot.lane.b32.xlu0 %v278, 126
        %v328 = vpop.permute.xlu0 %327
        %329 = vrot.lane.b32.xlu0 %v280, 126
        %v330 = vpop.permute.xlu0 %329
        %331 = vrot.lane.b32.xlu0 %v283, 126
        %v332 = vpop.permute.xlu0 %331
        %333 = vrot.lane.b32.xlu0 %v285, 126
        %v334 = vpop.permute.xlu0 %333
        %335 = vrot.lane.b32.xlu0 %v288, 126
        %v336 = vpop.permute.xlu0 %335
        %337 = vrot.lane.b32.xlu0 %v290, 126
        %v338 = vpop.permute.xlu0 %337
        %vm347 = vcmask 1045504
        %v348 = vrot.slane %v198, 2
        %v349 = vrot.slane %v199, 2
        %v350 = vsel %vm347, %v348, %v349
        %v351 = vrot.slane %v200, 2
        %v352 = vsel %vm347, %v349, %v351
        %v353 = vrot.slane %v201, 2
        %v354 = vrot.slane %v202, 2
        %v355 = vsel %vm347, %v353, %v354
        %v356 = vrot.slane %v203, 2
        %v357 = vsel %vm347, %v354, %v356
        %v358 = vrot.slane %v204, 2
        %v359 = vrot.slane %v205, 2
        %v360 = vsel %vm347, %v358, %v359
        %v361 = vrot.slane %v206, 2
        %v362 = vsel %vm347, %v359, %v361
        %v363 = vrot.slane %v207, 2
        %v364 = vrot.slane %v208, 2
        %v365 = vsel %vm347, %v363, %v364
        %v366 = vrot.slane %v209, 2
        %v367 = vsel %vm347, %v364, %v366
        %376 = vrot.lane.b32.xlu0 %v350, 127
        %v377 = vpop.permute.xlu0 %376
        %378 = vrot.lane.b32.xlu0 %v352, 127
        %v379 = vpop.permute.xlu0 %378
        %380 = vrot.lane.b32.xlu0 %v355, 127
        %v381 = vpop.permute.xlu0 %380
        %382 = vrot.lane.b32.xlu0 %v357, 127
        %v383 = vpop.permute.xlu0 %382
        %384 = vrot.lane.b32.xlu0 %v360, 127
        %v385 = vpop.permute.xlu0 %384
        %386 = vrot.lane.b32.xlu0 %v362, 127
        %v387 = vpop.permute.xlu0 %386
        %388 = vrot.lane.b32.xlu0 %v365, 127
        %v389 = vpop.permute.xlu0 %388
        %390 = vrot.lane.b32.xlu0 %v367, 127
        %v391 = vpop.permute.xlu0 %390
        %400 = vrot.lane.b32.xlu0 %v350, 126
        %v401 = vpop.permute.xlu0 %400
        %402 = vrot.lane.b32.xlu0 %v352, 126
        %v403 = vpop.permute.xlu0 %402
        %404 = vrot.lane.b32.xlu0 %v355, 126
        %v405 = vpop.permute.xlu0 %404
        %406 = vrot.lane.b32.xlu0 %v357, 126
        %v407 = vpop.permute.xlu0 %406
        %408 = vrot.lane.b32.xlu0 %v360, 126
        %v409 = vpop.permute.xlu0 %408
        %410 = vrot.lane.b32.xlu0 %v362, 126
        %v411 = vpop.permute.xlu0 %410
        %412 = vrot.lane.b32.xlu0 %v365, 126
        %v413 = vpop.permute.xlu0 %412
        %414 = vrot.lane.b32.xlu0 %v367, 126
        %v415 = vpop.permute.xlu0 %414
        %v424 = vcombine.low %v198, %v204
        %v425 = vcombine.high %v198, %v204
        %v427 = vunpack.c.l.s4 1983009808
        %v428 = vunpack.c.0.s8 %v427
        %v429 = vlaneseq
        %v430 = vshrl.u32 %v429, 7
        %v431 = vsub.s32 %v428, %v430
        %v432 = vrot.slane %v424, %v431
        %v434 = vunpack.c.l.s4 1983009808
        %v435 = vunpack.c.0.s8 %v434
        %v436 = vlaneseq
        %v437 = vshrl.u32 %v436, 7
        %v438 = vsub.s32 %v435, %v437
        %v439 = vrot.slane %v425, %v438
        %v440 = vcombine.low %v201, %v207
        %v441 = vcombine.high %v201, %v207
        %v443 = vunpack.c.l.s4 1983009808
        %v444 = vunpack.c.0.s8 %v443
        %v445 = vlaneseq
        %v446 = vshrl.u32 %v445, 7
        %v447 = vsub.s32 %v444, %v446
        %v448 = vrot.slane %v440, %v447
        %v450 = vunpack.c.l.s4 1983009808
        %v451 = vunpack.c.0.s8 %v450
        %v452 = vlaneseq
        %v453 = vshrl.u32 %v452, 7
        %v454 = vsub.s32 %v451, %v453
        %v455 = vrot.slane %v441, %v454
        %v456 = vcombine.low %v219, %v227
        %v457 = vcombine.high %v219, %v227
        %v459 = vunpack.c.l.s4 1983009808
        %v460 = vunpack.c.0.s8 %v459
        %v461 = vlaneseq
        %v462 = vshrl.u32 %v461, 7
        %v463 = vsub.s32 %v460, %v462
        %v464 = vrot.slane %v456, %v463
        %v466 = vunpack.c.l.s4 1983009808
        %v467 = vunpack.c.0.s8 %v466
        %v468 = vlaneseq
        %v469 = vshrl.u32 %v468, 7
        %v470 = vsub.s32 %v467, %v469
        %v471 = vrot.slane %v457, %v470
        %v472 = vcombine.low %v223, %v231
        %v473 = vcombine.high %v223, %v231
        %v475 = vunpack.c.l.s4 1983009808
        %v476 = vunpack.c.0.s8 %v475
        %v477 = vlaneseq
        %v478 = vshrl.u32 %v477, 7
        %v479 = vsub.s32 %v476, %v478
        %v480 = vrot.slane %v472, %v479
        %v482 = vunpack.c.l.s4 1983009808
        %v483 = vunpack.c.0.s8 %v482
        %v484 = vlaneseq
        %v485 = vshrl.u32 %v484, 7
        %v486 = vsub.s32 %v483, %v485
        %v487 = vrot.slane %v473, %v486
        %v488 = vcombine.low %v432, %v448
        %v489 = vcombine.high %v432, %v448
        %v491 = vunpack.c.l.s4 1934713408
        %v492 = vunpack.c.0.s8 %v491
        %v493 = vlaneseq
        %v494 = vshrl.u32 %v493, 7
        %v495 = vsub.s32 %v492, %v494
        %v496 = vrot.slane %v488, %v495
        %v498 = vunpack.c.l.s4 1934713408
        %v499 = vunpack.c.0.s8 %v498
        %v500 = vlaneseq
        %v501 = vshrl.u32 %v500, 7
        %v502 = vsub.s32 %v499, %v501
        %v503 = vrot.slane %v489, %v502
        %v504 = vcombine.low %v439, %v455
        %v505 = vcombine.high %v439, %v455
        %v507 = vunpack.c.l.s4 1934713408
        %v508 = vunpack.c.0.s8 %v507
        %v509 = vlaneseq
        %v510 = vshrl.u32 %v509, 7
        %v511 = vsub.s32 %v508, %v510
        %v512 = vrot.slane %v504, %v511
        %v514 = vunpack.c.l.s4 1934713408
        %v515 = vunpack.c.0.s8 %v514
        %v516 = vlaneseq
        %v517 = vshrl.u32 %v516, 7
        %v518 = vsub.s32 %v515, %v517
        %v519 = vrot.slane %v505, %v518
        %v520 = vcombine.low %v464, %v480
        %v521 = vcombine.high %v464, %v480
        %v523 = vunpack.c.l.s4 1934713408
        %v524 = vunpack.c.0.s8 %v523
        %v525 = vlaneseq
        %v526 = vshrl.u32 %v525, 7
        %v527 = vsub.s32 %v524, %v526
        %v528 = vrot.slane %v520, %v527
        %v530 = vunpack.c.l.s4 1934713408
        %v531 = vunpack.c.0.s8 %v530
        %v532 = vlaneseq
        %v533 = vshrl.u32 %v532, 7
        %v534 = vsub.s32 %v531, %v533
        %v535 = vrot.slane %v521, %v534
        %v536 = vcombine.low %v471, %v487
        %v537 = vcombine.high %v471, %v487
        %v539 = vunpack.c.l.s4 1934713408
        %v540 = vunpack.c.0.s8 %v539
        %v541 = vlaneseq
        %v542 = vshrl.u32 %v541, 7
        %v543 = vsub.s32 %v540, %v542
        %v544 = vrot.slane %v536, %v543
        %v546 = vunpack.c.l.s4 1934713408
        %v547 = vunpack.c.0.s8 %v546
        %v548 = vlaneseq
        %v549 = vshrl.u32 %v548, 7
        %v550 = vsub.s32 %v547, %v549
        %v551 = vrot.slane %v537, %v550
        %v552 = vcombine.low %v496, %v528
        %v553 = vcombine.high %v496, %v528
        %v554 = vcombine.low %v503, %v535
        %v555 = vcombine.high %v503, %v535
        %v556 = vcombine.low %v512, %v544
        %v557 = vcombine.high %v512, %v544
        %v558 = vcombine.low %v519, %v551
        %v559 = vcombine.high %v519, %v551
        %v560 = vcombine.low %v243, %v251
        %v561 = vcombine.high %v243, %v251
        %v563 = vunpack.c.l.s4 1983009808
        %v564 = vunpack.c.0.s8 %v563
        %v565 = vlaneseq
        %v566 = vshrl.u32 %v565, 7
        %v567 = vsub.s32 %v564, %v566
        %v568 = vrot.slane %v560, %v567
        %v570 = vunpack.c.l.s4 1983009808
        %v571 = vunpack.c.0.s8 %v570
        %v572 = vlaneseq
        %v573 = vshrl.u32 %v572, 7
        %v574 = vsub.s32 %v571, %v573
        %v575 = vrot.slane %v561, %v574
        %v576 = vcombine.low %v247, %v255
        %v577 = vcombine.high %v247, %v255
        %v579 = vunpack.c.l.s4 1983009808
        %v580 = vunpack.c.0.s8 %v579
        %v581 = vlaneseq
        %v582 = vshrl.u32 %v581, 7
        %v583 = vsub.s32 %v580, %v582
        %v584 = vrot.slane %v576, %v583
        %v586 = vunpack.c.l.s4 1983009808
        %v587 = vunpack.c.0.s8 %v586
        %v588 = vlaneseq
        %v589 = vshrl.u32 %v588, 7
        %v590 = vsub.s32 %v587, %v589
        %v591 = vrot.slane %v577, %v590
        %v592 = vcombine.low %v273, %v283
        %v593 = vcombine.high %v273, %v283
        %v595 = vunpack.c.l.s4 1983009808
        %v596 = vunpack.c.0.s8 %v595
        %v597 = vlaneseq
        %v598 = vshrl.u32 %v597, 7
        %v599 = vsub.s32 %v596, %v598
        %v600 = vrot.slane %v592, %v599
        %v602 = vunpack.c.l.s4 1983009808
        %v603 = vunpack.c.0.s8 %v602
        %v604 = vlaneseq
        %v605 = vshrl.u32 %v604, 7
        %v606 = vsub.s32 %v603, %v605
        %v607 = vrot.slane %v593, %v606
        %v608 = vcombine.low %v278, %v288
        %v609 = vcombine.high %v278, %v288
        %v611 = vunpack.c.l.s4 1983009808
        %v612 = vunpack.c.0.s8 %v611
        %v613 = vlaneseq
        %v614 = vshrl.u32 %v613, 7
        %v615 = vsub.s32 %v612, %v614
        %v616 = vrot.slane %v608, %v615
        %v618 = vunpack.c.l.s4 1983009808
        %v619 = vunpack.c.0.s8 %v618
        %v620 = vlaneseq
        %v621 = vshrl.u32 %v620, 7
        %v622 = vsub.s32 %v619, %v621
        %v623 = vrot.slane %v609, %v622
        %v624 = vcombine.low %v568, %v584
        %v625 = vcombine.high %v568, %v584
        %v627 = vunpack.c.l.s4 1934713408
        %v628 = vunpack.c.0.s8 %v627
        %v629 = vlaneseq
        %v630 = vshrl.u32 %v629, 7
        %v631 = vsub.s32 %v628, %v630
        %v632 = vrot.slane %v624, %v631
        %v634 = vunpack.c.l.s4 1934713408
        %v635 = vunpack.c.0.s8 %v634
        %v636 = vlaneseq
        %v637 = vshrl.u32 %v636, 7
        %v638 = vsub.s32 %v635, %v637
        %v639 = vrot.slane %v625, %v638
        %v640 = vcombine.low %v575, %v591
        %v641 = vcombine.high %v575, %v591
        %v643 = vunpack.c.l.s4 1934713408
        %v644 = vunpack.c.0.s8 %v643
        %v645 = vlaneseq
        %v646 = vshrl.u32 %v645, 7
        %v647 = vsub.s32 %v644, %v646
        %v648 = vrot.slane %v640, %v647
        %v650 = vunpack.c.l.s4 1934713408
        %v651 = vunpack.c.0.s8 %v650
        %v652 = vlaneseq
        %v653 = vshrl.u32 %v652, 7
        %v654 = vsub.s32 %v651, %v653
        %v655 = vrot.slane %v641, %v654
        %v656 = vcombine.low %v600, %v616
        %v657 = vcombine.high %v600, %v616
        %v659 = vunpack.c.l.s4 1934713408
        %v660 = vunpack.c.0.s8 %v659
        %v661 = vlaneseq
        %v662 = vshrl.u32 %v661, 7
        %v663 = vsub.s32 %v660, %v662
        %v664 = vrot.slane %v656, %v663
        %v666 = vunpack.c.l.s4 1934713408
        %v667 = vunpack.c.0.s8 %v666
        %v668 = vlaneseq
        %v669 = vshrl.u32 %v668, 7
        %v670 = vsub.s32 %v667, %v669
        %v671 = vrot.slane %v657, %v670
        %v672 = vcombine.low %v607, %v623
        %v673 = vcombine.high %v607, %v623
        %v675 = vunpack.c.l.s4 1934713408
        %v676 = vunpack.c.0.s8 %v675
        %v677 = vlaneseq
        %v678 = vshrl.u32 %v677, 7
        %v679 = vsub.s32 %v676, %v678
        %v680 = vrot.slane %v672, %v679
        %v682 = vunpack.c.l.s4 1934713408
        %v683 = vunpack.c.0.s8 %v682
        %v684 = vlaneseq
        %v685 = vshrl.u32 %v684, 7
        %v686 = vsub.s32 %v683, %v685
        %v687 = vrot.slane %v673, %v686
        %v688 = vcombine.low %v632, %v664
        %v689 = vcombine.high %v632, %v664
        %v690 = vcombine.low %v639, %v671
        %v691 = vcombine.high %v639, %v671
        %v692 = vcombine.low %v648, %v680
        %v693 = vcombine.high %v648, %v680
        %v694 = vcombine.low %v655, %v687
        %v695 = vcombine.high %v655, %v687
        %v696 = vcombine.low %v300, %v308
        %v697 = vcombine.high %v300, %v308
        %v699 = vunpack.c.l.s4 1983009808
        %v700 = vunpack.c.0.s8 %v699
        %v701 = vlaneseq
        %v702 = vshrl.u32 %v701, 7
        %v703 = vsub.s32 %v700, %v702
        %v704 = vrot.slane %v696, %v703
        %v706 = vunpack.c.l.s4 1983009808
        %v707 = vunpack.c.0.s8 %v706
        %v708 = vlaneseq
        %v709 = vshrl.u32 %v708, 7
        %v710 = vsub.s32 %v707, %v709
        %v711 = vrot.slane %v697, %v710
        %v712 = vcombine.low %v304, %v312
        %v713 = vcombine.high %v304, %v312
        %v715 = vunpack.c.l.s4 1983009808
        %v716 = vunpack.c.0.s8 %v715
        %v717 = vlaneseq
        %v718 = vshrl.u32 %v717, 7
        %v719 = vsub.s32 %v716, %v718
        %v720 = vrot.slane %v712, %v719
        %v722 = vunpack.c.l.s4 1983009808
        %v723 = vunpack.c.0.s8 %v722
        %v724 = vlaneseq
        %v725 = vshrl.u32 %v724, 7
        %v726 = vsub.s32 %v723, %v725
        %v727 = vrot.slane %v713, %v726
        %v728 = vcombine.low %v324, %v332
        %v729 = vcombine.high %v324, %v332
        %v731 = vunpack.c.l.s4 1983009808
        %v732 = vunpack.c.0.s8 %v731
        %v733 = vlaneseq
        %v734 = vshrl.u32 %v733, 7
        %v735 = vsub.s32 %v732, %v734
        %v736 = vrot.slane %v728, %v735
        %v738 = vunpack.c.l.s4 1983009808
        %v739 = vunpack.c.0.s8 %v738
        %v740 = vlaneseq
        %v741 = vshrl.u32 %v740, 7
        %v742 = vsub.s32 %v739, %v741
        %v743 = vrot.slane %v729, %v742
        %v744 = vcombine.low %v328, %v336
        %v745 = vcombine.high %v328, %v336
        %v747 = vunpack.c.l.s4 1983009808
        %v748 = vunpack.c.0.s8 %v747
        %v749 = vlaneseq
        %v750 = vshrl.u32 %v749, 7
        %v751 = vsub.s32 %v748, %v750
        %v752 = vrot.slane %v744, %v751
        %v754 = vunpack.c.l.s4 1983009808
        %v755 = vunpack.c.0.s8 %v754
        %v756 = vlaneseq
        %v757 = vshrl.u32 %v756, 7
        %v758 = vsub.s32 %v755, %v757
        %v759 = vrot.slane %v745, %v758
        %v760 = vcombine.low %v704, %v720
        %v761 = vcombine.high %v704, %v720
        %v763 = vunpack.c.l.s4 1934713408
        %v764 = vunpack.c.0.s8 %v763
        %v765 = vlaneseq
        %v766 = vshrl.u32 %v765, 7
        %v767 = vsub.s32 %v764, %v766
        %v768 = vrot.slane %v760, %v767
        %v770 = vunpack.c.l.s4 1934713408
        %v771 = vunpack.c.0.s8 %v770
        %v772 = vlaneseq
        %v773 = vshrl.u32 %v772, 7
        %v774 = vsub.s32 %v771, %v773
        %v775 = vrot.slane %v761, %v774
        %v776 = vcombine.low %v711, %v727
        %v777 = vcombine.high %v711, %v727
        %v779 = vunpack.c.l.s4 1934713408
        %v780 = vunpack.c.0.s8 %v779
        %v781 = vlaneseq
        %v782 = vshrl.u32 %v781, 7
        %v783 = vsub.s32 %v780, %v782
        %v784 = vrot.slane %v776, %v783
        %v786 = vunpack.c.l.s4 1934713408
        %v787 = vunpack.c.0.s8 %v786
        %v788 = vlaneseq
        %v789 = vshrl.u32 %v788, 7
        %v790 = vsub.s32 %v787, %v789
        %v791 = vrot.slane %v777, %v790
        %v792 = vcombine.low %v736, %v752
        %v793 = vcombine.high %v736, %v752
        %v795 = vunpack.c.l.s4 1934713408
        %v796 = vunpack.c.0.s8 %v795
        %v797 = vlaneseq
        %v798 = vshrl.u32 %v797, 7
        %v799 = vsub.s32 %v796, %v798
        %v800 = vrot.slane %v792, %v799
        %v802 = vunpack.c.l.s4 1934713408
        %v803 = vunpack.c.0.s8 %v802
        %v804 = vlaneseq
        %v805 = vshrl.u32 %v804, 7
        %v806 = vsub.s32 %v803, %v805
        %v807 = vrot.slane %v793, %v806
        %v808 = vcombine.low %v743, %v759
        %v809 = vcombine.high %v743, %v759
        %v811 = vunpack.c.l.s4 1934713408
        %v812 = vunpack.c.0.s8 %v811
        %v813 = vlaneseq
        %v814 = vshrl.u32 %v813, 7
        %v815 = vsub.s32 %v812, %v814
        %v816 = vrot.slane %v808, %v815
        %v818 = vunpack.c.l.s4 1934713408
        %v819 = vunpack.c.0.s8 %v818
        %v820 = vlaneseq
        %v821 = vshrl.u32 %v820, 7
        %v822 = vsub.s32 %v819, %v821
        %v823 = vrot.slane %v809, %v822
        %v824 = vcombine.low %v768, %v800
        %v825 = vcombine.high %v768, %v800
        %v826 = vcombine.low %v775, %v807
        %v827 = vcombine.high %v775, %v807
        %v828 = vcombine.low %v784, %v816
        %v829 = vcombine.high %v784, %v816
        %v830 = vcombine.low %v791, %v823
        %v831 = vcombine.high %v791, %v823
        %v832 = vcombine.low %v350, %v360
        %v833 = vcombine.high %v350, %v360
        %v835 = vunpack.c.l.s4 1983009808
        %v836 = vunpack.c.0.s8 %v835
        %v837 = vlaneseq
        %v838 = vshrl.u32 %v837, 7
        %v839 = vsub.s32 %v836, %v838
        %v840 = vrot.slane %v832, %v839
        %v842 = vunpack.c.l.s4 1983009808
        %v843 = vunpack.c.0.s8 %v842
        %v844 = vlaneseq
        %v845 = vshrl.u32 %v844, 7
        %v846 = vsub.s32 %v843, %v845
        %v847 = vrot.slane %v833, %v846
        %v848 = vcombine.low %v355, %v365
        %v849 = vcombine.high %v355, %v365
        %v851 = vunpack.c.l.s4 1983009808
        %v852 = vunpack.c.0.s8 %v851
        %v853 = vlaneseq
        %v854 = vshrl.u32 %v853, 7
        %v855 = vsub.s32 %v852, %v854
        %v856 = vrot.slane %v848, %v855
        %v858 = vunpack.c.l.s4 1983009808
        %v859 = vunpack.c.0.s8 %v858
        %v860 = vlaneseq
        %v861 = vshrl.u32 %v860, 7
        %v862 = vsub.s32 %v859, %v861
        %v863 = vrot.slane %v849, %v862
        %v864 = vcombine.low %v377, %v385
        %v865 = vcombine.high %v377, %v385
        %v867 = vunpack.c.l.s4 1983009808
        %v868 = vunpack.c.0.s8 %v867
        %v869 = vlaneseq
        %v870 = vshrl.u32 %v869, 7
        %v871 = vsub.s32 %v868, %v870
        %v872 = vrot.slane %v864, %v871
        %v874 = vunpack.c.l.s4 1983009808
        %v875 = vunpack.c.0.s8 %v874
        %v876 = vlaneseq
        %v877 = vshrl.u32 %v876, 7
        %v878 = vsub.s32 %v875, %v877
        %v879 = vrot.slane %v865, %v878
        %v880 = vcombine.low %v381, %v389
        %v881 = vcombine.high %v381, %v389
        %v883 = vunpack.c.l.s4 1983009808
        %v884 = vunpack.c.0.s8 %v883
        %v885 = vlaneseq
        %v886 = vshrl.u32 %v885, 7
        %v887 = vsub.s32 %v884, %v886
        %v888 = vrot.slane %v880, %v887
        %v890 = vunpack.c.l.s4 1983009808
        %v891 = vunpack.c.0.s8 %v890
        %v892 = vlaneseq
        %v893 = vshrl.u32 %v892, 7
        %v894 = vsub.s32 %v891, %v893
        %v895 = vrot.slane %v881, %v894
        %v896 = vcombine.low %v840, %v856
        %v897 = vcombine.high %v840, %v856
        %v899 = vunpack.c.l.s4 1934713408
        %v900 = vunpack.c.0.s8 %v899
        %v901 = vlaneseq
        %v902 = vshrl.u32 %v901, 7
        %v903 = vsub.s32 %v900, %v902
        %v904 = vrot.slane %v896, %v903
        %v906 = vunpack.c.l.s4 1934713408
        %v907 = vunpack.c.0.s8 %v906
        %v908 = vlaneseq
        %v909 = vshrl.u32 %v908, 7
        %v910 = vsub.s32 %v907, %v909
        %v911 = vrot.slane %v897, %v910
        %v912 = vcombine.low %v847, %v863
        %v913 = vcombine.high %v847, %v863
        %v915 = vunpack.c.l.s4 1934713408
        %v916 = vunpack.c.0.s8 %v915
        %v917 = vlaneseq
        %v918 = vshrl.u32 %v917, 7
        %v919 = vsub.s32 %v916, %v918
        %v920 = vrot.slane %v912, %v919
        %v922 = vunpack.c.l.s4 1934713408
        %v923 = vunpack.c.0.s8 %v922
        %v924 = vlaneseq
        %v925 = vshrl.u32 %v924, 7
        %v926 = vsub.s32 %v923, %v925
        %v927 = vrot.slane %v913, %v926
        %v928 = vcombine.low %v872, %v888
        %v929 = vcombine.high %v872, %v888
        %v931 = vunpack.c.l.s4 1934713408
        %v932 = vunpack.c.0.s8 %v931
        %v933 = vlaneseq
        %v934 = vshrl.u32 %v933, 7
        %v935 = vsub.s32 %v932, %v934
        %v936 = vrot.slane %v928, %v935
        %v938 = vunpack.c.l.s4 1934713408
        %v939 = vunpack.c.0.s8 %v938
        %v940 = vlaneseq
        %v941 = vshrl.u32 %v940, 7
        %v942 = vsub.s32 %v939, %v941
        %v943 = vrot.slane %v929, %v942
        %v944 = vcombine.low %v879, %v895
        %v945 = vcombine.high %v879, %v895
        %v947 = vunpack.c.l.s4 1934713408
        %v948 = vunpack.c.0.s8 %v947
        %v949 = vlaneseq
        %v950 = vshrl.u32 %v949, 7
        %v951 = vsub.s32 %v948, %v950
        %v952 = vrot.slane %v944, %v951
        %v954 = vunpack.c.l.s4 1934713408
        %v955 = vunpack.c.0.s8 %v954
        %v956 = vlaneseq
        %v957 = vshrl.u32 %v956, 7
        %v958 = vsub.s32 %v955, %v957
        %v959 = vrot.slane %v945, %v958
        %v960 = vcombine.low %v904, %v936
        %v961 = vcombine.high %v904, %v936
        %v962 = vcombine.low %v911, %v943
        %v963 = vcombine.high %v911, %v943
        %v964 = vcombine.low %v920, %v952
        %v965 = vcombine.high %v920, %v952
        %v966 = vcombine.low %v927, %v959
        %v967 = vcombine.high %v927, %v959
        %v968 = vcombine.low %v401, %v409
        %v969 = vcombine.high %v401, %v409
        %v971 = vunpack.c.l.s4 1983009808
        %v972 = vunpack.c.0.s8 %v971
        %v973 = vlaneseq
        %v974 = vshrl.u32 %v973, 7
        %v975 = vsub.s32 %v972, %v974
        %v976 = vrot.slane %v968, %v975
        %v978 = vunpack.c.l.s4 1983009808
        %v979 = vunpack.c.0.s8 %v978
        %v980 = vlaneseq
        %v981 = vshrl.u32 %v980, 7
        %v982 = vsub.s32 %v979, %v981
        %v983 = vrot.slane %v969, %v982
        %v984 = vcombine.low %v405, %v413
        %v985 = vcombine.high %v405, %v413
        %v987 = vunpack.c.l.s4 1983009808
        %v988 = vunpack.c.0.s8 %v987
        %v989 = vlaneseq
        %v990 = vshrl.u32 %v989, 7
        %v991 = vsub.s32 %v988, %v990
        %v992 = vrot.slane %v984, %v991
        %v994 = vunpack.c.l.s4 1983009808
        %v995 = vunpack.c.0.s8 %v994
        %v996 = vlaneseq
        %v997 = vshrl.u32 %v996, 7
        %v998 = vsub.s32 %v995, %v997
        %v999 = vrot.slane %v985, %v998
        %v1000 = vcombine.low %v976, %v992
        %v1001 = vcombine.high %v976, %v992
        %v1003 = vunpack.c.l.s4 1934713408
        %v1004 = vunpack.c.0.s8 %v1003
        %v1005 = vlaneseq
        %v1006 = vshrl.u32 %v1005, 7
        %v1007 = vsub.s32 %v1004, %v1006
        %v1008 = vrot.slane %v1000, %v1007
        %v1010 = vunpack.c.l.s4 1934713408
        %v1011 = vunpack.c.0.s8 %v1010
        %v1012 = vlaneseq
        %v1013 = vshrl.u32 %v1012, 7
        %v1014 = vsub.s32 %v1011, %v1013
        %v1015 = vrot.slane %v1001, %v1014
        %v1016 = vcombine.low %v983, %v999
        %v1017 = vcombine.high %v983, %v999
        %v1019 = vunpack.c.l.s4 1934713408
        %v1020 = vunpack.c.0.s8 %v1019
        %v1021 = vlaneseq
        %v1022 = vshrl.u32 %v1021, 7
        %v1023 = vsub.s32 %v1020, %v1022
        %v1024 = vrot.slane %v1016, %v1023
        %v1026 = vunpack.c.l.s4 1934713408
        %v1027 = vunpack.c.0.s8 %v1026
        %v1028 = vlaneseq
        %v1029 = vshrl.u32 %v1028, 7
        %v1030 = vsub.s32 %v1027, %v1029
        %v1031 = vrot.slane %v1017, %v1030
        %v1032 = vcombine.high %v1008, 0.0
        %v1033 = vcombine.high %v1015, 0.0
        %v1034 = vcombine.high %v1024, 0.0
        %v1035 = vcombine.high %v1031, 0.0
        %v1036 = vcombine.low %v199, %v205
        %v1037 = vcombine.high %v199, %v205
        %v1039 = vunpack.c.l.s4 1983009808
        %v1040 = vunpack.c.0.s8 %v1039
        %v1041 = vlaneseq
        %v1042 = vshrl.u32 %v1041, 7
        %v1043 = vsub.s32 %v1040, %v1042
        %v1044 = vrot.slane %v1036, %v1043
        %v1046 = vunpack.c.l.s4 1983009808
        %v1047 = vunpack.c.0.s8 %v1046
        %v1048 = vlaneseq
        %v1049 = vshrl.u32 %v1048, 7
        %v1050 = vsub.s32 %v1047, %v1049
        %v1051 = vrot.slane %v1037, %v1050
        %v1052 = vcombine.low %v202, %v208
        %v1053 = vcombine.high %v202, %v208
        %v1055 = vunpack.c.l.s4 1983009808
        %v1056 = vunpack.c.0.s8 %v1055
        %v1057 = vlaneseq
        %v1058 = vshrl.u32 %v1057, 7
        %v1059 = vsub.s32 %v1056, %v1058
        %v1060 = vrot.slane %v1052, %v1059
        %v1062 = vunpack.c.l.s4 1983009808
        %v1063 = vunpack.c.0.s8 %v1062
        %v1064 = vlaneseq
        %v1065 = vshrl.u32 %v1064, 7
        %v1066 = vsub.s32 %v1063, %v1065
        %v1067 = vrot.slane %v1053, %v1066
        %v1068 = vcombine.low %v221, %v229
        %v1069 = vcombine.high %v221, %v229
        %v1071 = vunpack.c.l.s4 1983009808
        %v1072 = vunpack.c.0.s8 %v1071
        %v1073 = vlaneseq
        %v1074 = vshrl.u32 %v1073, 7
        %v1075 = vsub.s32 %v1072, %v1074
        %v1076 = vrot.slane %v1068, %v1075
        %v1078 = vunpack.c.l.s4 1983009808
        %v1079 = vunpack.c.0.s8 %v1078
        %v1080 = vlaneseq
        %v1081 = vshrl.u32 %v1080, 7
        %v1082 = vsub.s32 %v1079, %v1081
        %v1083 = vrot.slane %v1069, %v1082
        %v1084 = vcombine.low %v225, %v233
        %v1085 = vcombine.high %v225, %v233
        %v1087 = vunpack.c.l.s4 1983009808
        %v1088 = vunpack.c.0.s8 %v1087
        %v1089 = vlaneseq
        %v1090 = vshrl.u32 %v1089, 7
        %v1091 = vsub.s32 %v1088, %v1090
        %v1092 = vrot.slane %v1084, %v1091
        %v1094 = vunpack.c.l.s4 1983009808
        %v1095 = vunpack.c.0.s8 %v1094
        %v1096 = vlaneseq
        %v1097 = vshrl.u32 %v1096, 7
        %v1098 = vsub.s32 %v1095, %v1097
        %v1099 = vrot.slane %v1085, %v1098
        %v1100 = vcombine.low %v1044, %v1060
        %v1101 = vcombine.high %v1044, %v1060
        %v1103 = vunpack.c.l.s4 1934713408
        %v1104 = vunpack.c.0.s8 %v1103
        %v1105 = vlaneseq
        %v1106 = vshrl.u32 %v1105, 7
        %v1107 = vsub.s32 %v1104, %v1106
        %v1108 = vrot.slane %v1100, %v1107
        %v1110 = vunpack.c.l.s4 1934713408
        %v1111 = vunpack.c.0.s8 %v1110
        %v1112 = vlaneseq
        %v1113 = vshrl.u32 %v1112, 7
        %v1114 = vsub.s32 %v1111, %v1113
        %v1115 = vrot.slane %v1101, %v1114
        %v1116 = vcombine.low %v1051, %v1067
        %v1117 = vcombine.high %v1051, %v1067
        %v1119 = vunpack.c.l.s4 1934713408
        %v1120 = vunpack.c.0.s8 %v1119
        %v1121 = vlaneseq
        %v1122 = vshrl.u32 %v1121, 7
        %v1123 = vsub.s32 %v1120, %v1122
        %v1124 = vrot.slane %v1116, %v1123
        %v1126 = vunpack.c.l.s4 1934713408
        %v1127 = vunpack.c.0.s8 %v1126
        %v1128 = vlaneseq
        %v1129 = vshrl.u32 %v1128, 7
        %v1130 = vsub.s32 %v1127, %v1129
        %v1131 = vrot.slane %v1117, %v1130
        %v1132 = vcombine.low %v1076, %v1092
        %v1133 = vcombine.high %v1076, %v1092
        %v1135 = vunpack.c.l.s4 1934713408
        %v1136 = vunpack.c.0.s8 %v1135
        %v1137 = vlaneseq
        %v1138 = vshrl.u32 %v1137, 7
        %v1139 = vsub.s32 %v1136, %v1138
        %v1140 = vrot.slane %v1132, %v1139
        %v1142 = vunpack.c.l.s4 1934713408
        %v1143 = vunpack.c.0.s8 %v1142
        %v1144 = vlaneseq
        %v1145 = vshrl.u32 %v1144, 7
        %v1146 = vsub.s32 %v1143, %v1145
        %v1147 = vrot.slane %v1133, %v1146
        %v1148 = vcombine.low %v1083, %v1099
        %v1149 = vcombine.high %v1083, %v1099
        %v1151 = vunpack.c.l.s4 1934713408
        %v1152 = vunpack.c.0.s8 %v1151
        %v1153 = vlaneseq
        %v1154 = vshrl.u32 %v1153, 7
        %v1155 = vsub.s32 %v1152, %v1154
        %v1156 = vrot.slane %v1148, %v1155
        %v1158 = vunpack.c.l.s4 1934713408
        %v1159 = vunpack.c.0.s8 %v1158
        %v1160 = vlaneseq
        %v1161 = vshrl.u32 %v1160, 7
        %v1162 = vsub.s32 %v1159, %v1161
        %v1163 = vrot.slane %v1149, %v1162
        %v1164 = vcombine.low %v1108, %v1140
        %v1165 = vcombine.high %v1108, %v1140
        %v1166 = vcombine.low %v1115, %v1147
        %v1167 = vcombine.high %v1115, %v1147
        %v1168 = vcombine.low %v1124, %v1156
        %v1169 = vcombine.high %v1124, %v1156
        %v1170 = vcombine.low %v1131, %v1163
        %v1171 = vcombine.high %v1131, %v1163
        %v1172 = vcombine.low %v245, %v253
        %v1173 = vcombine.high %v245, %v253
        %v1175 = vunpack.c.l.s4 1983009808
        %v1176 = vunpack.c.0.s8 %v1175
        %v1177 = vlaneseq
        %v1178 = vshrl.u32 %v1177, 7
        %v1179 = vsub.s32 %v1176, %v1178
        %v1180 = vrot.slane %v1172, %v1179
        %v1182 = vunpack.c.l.s4 1983009808
        %v1183 = vunpack.c.0.s8 %v1182
        %v1184 = vlaneseq
        %v1185 = vshrl.u32 %v1184, 7
        %v1186 = vsub.s32 %v1183, %v1185
        %v1187 = vrot.slane %v1173, %v1186
        %v1188 = vcombine.low %v249, %v257
        %v1189 = vcombine.high %v249, %v257
        %v1191 = vunpack.c.l.s4 1983009808
        %v1192 = vunpack.c.0.s8 %v1191
        %v1193 = vlaneseq
        %v1194 = vshrl.u32 %v1193, 7
        %v1195 = vsub.s32 %v1192, %v1194
        %v1196 = vrot.slane %v1188, %v1195
        %v1198 = vunpack.c.l.s4 1983009808
        %v1199 = vunpack.c.0.s8 %v1198
        %v1200 = vlaneseq
        %v1201 = vshrl.u32 %v1200, 7
        %v1202 = vsub.s32 %v1199, %v1201
        %v1203 = vrot.slane %v1189, %v1202
        %v1204 = vcombine.low %v275, %v285
        %v1205 = vcombine.high %v275, %v285
        %v1207 = vunpack.c.l.s4 1983009808
        %v1208 = vunpack.c.0.s8 %v1207
        %v1209 = vlaneseq
        %v1210 = vshrl.u32 %v1209, 7
        %v1211 = vsub.s32 %v1208, %v1210
        %v1212 = vrot.slane %v1204, %v1211
        %v1214 = vunpack.c.l.s4 1983009808
        %v1215 = vunpack.c.0.s8 %v1214
        %v1216 = vlaneseq
        %v1217 = vshrl.u32 %v1216, 7
        %v1218 = vsub.s32 %v1215, %v1217
        %v1219 = vrot.slane %v1205, %v1218
        %v1220 = vcombine.low %v280, %v290
        %v1221 = vcombine.high %v280, %v290
        %v1223 = vunpack.c.l.s4 1983009808
        %v1224 = vunpack.c.0.s8 %v1223
        %v1225 = vlaneseq
        %v1226 = vshrl.u32 %v1225, 7
        %v1227 = vsub.s32 %v1224, %v1226
        %v1228 = vrot.slane %v1220, %v1227
        %v1230 = vunpack.c.l.s4 1983009808
        %v1231 = vunpack.c.0.s8 %v1230
        %v1232 = vlaneseq
        %v1233 = vshrl.u32 %v1232, 7
        %v1234 = vsub.s32 %v1231, %v1233
        %v1235 = vrot.slane %v1221, %v1234
        %v1236 = vcombine.low %v1180, %v1196
        %v1237 = vcombine.high %v1180, %v1196
        %v1239 = vunpack.c.l.s4 1934713408
        %v1240 = vunpack.c.0.s8 %v1239
        %v1241 = vlaneseq
        %v1242 = vshrl.u32 %v1241, 7
        %v1243 = vsub.s32 %v1240, %v1242
        %v1244 = vrot.slane %v1236, %v1243
        %v1246 = vunpack.c.l.s4 1934713408
        %v1247 = vunpack.c.0.s8 %v1246
        %v1248 = vlaneseq
        %v1249 = vshrl.u32 %v1248, 7
        %v1250 = vsub.s32 %v1247, %v1249
        %v1251 = vrot.slane %v1237, %v1250
        %v1252 = vcombine.low %v1187, %v1203
        %v1253 = vcombine.high %v1187, %v1203
        %v1255 = vunpack.c.l.s4 1934713408
        %v1256 = vunpack.c.0.s8 %v1255
        %v1257 = vlaneseq
        %v1258 = vshrl.u32 %v1257, 7
        %v1259 = vsub.s32 %v1256, %v1258
        %v1260 = vrot.slane %v1252, %v1259
        %v1262 = vunpack.c.l.s4 1934713408
        %v1263 = vunpack.c.0.s8 %v1262
        %v1264 = vlaneseq
        %v1265 = vshrl.u32 %v1264, 7
        %v1266 = vsub.s32 %v1263, %v1265
        %v1267 = vrot.slane %v1253, %v1266
        %v1268 = vcombine.low %v1212, %v1228
        %v1269 = vcombine.high %v1212, %v1228
        %v1271 = vunpack.c.l.s4 1934713408
        %v1272 = vunpack.c.0.s8 %v1271
        %v1273 = vlaneseq
        %v1274 = vshrl.u32 %v1273, 7
        %v1275 = vsub.s32 %v1272, %v1274
        %v1276 = vrot.slane %v1268, %v1275
        %v1278 = vunpack.c.l.s4 1934713408
        %v1279 = vunpack.c.0.s8 %v1278
        %v1280 = vlaneseq
        %v1281 = vshrl.u32 %v1280, 7
        %v1282 = vsub.s32 %v1279, %v1281
        %v1283 = vrot.slane %v1269, %v1282
        %v1284 = vcombine.low %v1219, %v1235
        %v1285 = vcombine.high %v1219, %v1235
        %v1287 = vunpack.c.l.s4 1934713408
        %v1288 = vunpack.c.0.s8 %v1287
        %v1289 = vlaneseq
        %v1290 = vshrl.u32 %v1289, 7
        %v1291 = vsub.s32 %v1288, %v1290
        %v1292 = vrot.slane %v1284, %v1291
        %v1294 = vunpack.c.l.s4 1934713408
        %v1295 = vunpack.c.0.s8 %v1294
        %v1296 = vlaneseq
        %v1297 = vshrl.u32 %v1296, 7
        %v1298 = vsub.s32 %v1295, %v1297
        %v1299 = vrot.slane %v1285, %v1298
        %v1300 = vcombine.low %v1244, %v1276
        %v1301 = vcombine.high %v1244, %v1276
        %v1302 = vcombine.low %v1251, %v1283
        %v1303 = vcombine.high %v1251, %v1283
        %v1304 = vcombine.low %v1260, %v1292
        %v1305 = vcombine.high %v1260, %v1292
        %v1306 = vcombine.low %v1267, %v1299
        %v1307 = vcombine.high %v1267, %v1299
        %v1308 = vcombine.low %v302, %v310
        %v1309 = vcombine.high %v302, %v310
        %v1311 = vunpack.c.l.s4 1983009808
        %v1312 = vunpack.c.0.s8 %v1311
        %v1313 = vlaneseq
        %v1314 = vshrl.u32 %v1313, 7
        %v1315 = vsub.s32 %v1312, %v1314
        %v1316 = vrot.slane %v1308, %v1315
        %v1318 = vunpack.c.l.s4 1983009808
        %v1319 = vunpack.c.0.s8 %v1318
        %v1320 = vlaneseq
        %v1321 = vshrl.u32 %v1320, 7
        %v1322 = vsub.s32 %v1319, %v1321
        %v1323 = vrot.slane %v1309, %v1322
        %v1324 = vcombine.low %v306, %v314
        %v1325 = vcombine.high %v306, %v314
        %v1327 = vunpack.c.l.s4 1983009808
        %v1328 = vunpack.c.0.s8 %v1327
        %v1329 = vlaneseq
        %v1330 = vshrl.u32 %v1329, 7
        %v1331 = vsub.s32 %v1328, %v1330
        %v1332 = vrot.slane %v1324, %v1331
        %v1334 = vunpack.c.l.s4 1983009808
        %v1335 = vunpack.c.0.s8 %v1334
        %v1336 = vlaneseq
        %v1337 = vshrl.u32 %v1336, 7
        %v1338 = vsub.s32 %v1335, %v1337
        %v1339 = vrot.slane %v1325, %v1338
        %v1340 = vcombine.low %v326, %v334
        %v1341 = vcombine.high %v326, %v334
        %v1343 = vunpack.c.l.s4 1983009808
        %v1344 = vunpack.c.0.s8 %v1343
        %v1345 = vlaneseq
        %v1346 = vshrl.u32 %v1345, 7
        %v1347 = vsub.s32 %v1344, %v1346
        %v1348 = vrot.slane %v1340, %v1347
        %v1350 = vunpack.c.l.s4 1983009808
        %v1351 = vunpack.c.0.s8 %v1350
        %v1352 = vlaneseq
        %v1353 = vshrl.u32 %v1352, 7
        %v1354 = vsub.s32 %v1351, %v1353
        %v1355 = vrot.slane %v1341, %v1354
        %v1356 = vcombine.low %v330, %v338
        %v1357 = vcombine.high %v330, %v338
        %v1359 = vunpack.c.l.s4 1983009808
        %v1360 = vunpack.c.0.s8 %v1359
        %v1361 = vlaneseq
        %v1362 = vshrl.u32 %v1361, 7
        %v1363 = vsub.s32 %v1360, %v1362
        %v1364 = vrot.slane %v1356, %v1363
        %v1366 = vunpack.c.l.s4 1983009808
        %v1367 = vunpack.c.0.s8 %v1366
        %v1368 = vlaneseq
        %v1369 = vshrl.u32 %v1368, 7
        %v1370 = vsub.s32 %v1367, %v1369
        %v1371 = vrot.slane %v1357, %v1370
        %v1372 = vcombine.low %v1316, %v1332
        %v1373 = vcombine.high %v1316, %v1332
        %v1375 = vunpack.c.l.s4 1934713408
        %v1376 = vunpack.c.0.s8 %v1375
        %v1377 = vlaneseq
        %v1378 = vshrl.u32 %v1377, 7
        %v1379 = vsub.s32 %v1376, %v1378
        %v1380 = vrot.slane %v1372, %v1379
        %v1382 = vunpack.c.l.s4 1934713408
        %v1383 = vunpack.c.0.s8 %v1382
        %v1384 = vlaneseq
        %v1385 = vshrl.u32 %v1384, 7
        %v1386 = vsub.s32 %v1383, %v1385
        %v1387 = vrot.slane %v1373, %v1386
        %v1388 = vcombine.low %v1323, %v1339
        %v1389 = vcombine.high %v1323, %v1339
        %v1391 = vunpack.c.l.s4 1934713408
        %v1392 = vunpack.c.0.s8 %v1391
        %v1393 = vlaneseq
        %v1394 = vshrl.u32 %v1393, 7
        %v1395 = vsub.s32 %v1392, %v1394
        %v1396 = vrot.slane %v1388, %v1395
        %v1398 = vunpack.c.l.s4 1934713408
        %v1399 = vunpack.c.0.s8 %v1398
        %v1400 = vlaneseq
        %v1401 = vshrl.u32 %v1400, 7
        %v1402 = vsub.s32 %v1399, %v1401
        %v1403 = vrot.slane %v1389, %v1402
        %v1404 = vcombine.low %v1348, %v1364
        %v1405 = vcombine.high %v1348, %v1364
        %v1407 = vunpack.c.l.s4 1934713408
        %v1408 = vunpack.c.0.s8 %v1407
        %v1409 = vlaneseq
        %v1410 = vshrl.u32 %v1409, 7
        %v1411 = vsub.s32 %v1408, %v1410
        %v1412 = vrot.slane %v1404, %v1411
        %v1414 = vunpack.c.l.s4 1934713408
        %v1415 = vunpack.c.0.s8 %v1414
        %v1416 = vlaneseq
        %v1417 = vshrl.u32 %v1416, 7
        %v1418 = vsub.s32 %v1415, %v1417
        %v1419 = vrot.slane %v1405, %v1418
        %v1420 = vcombine.low %v1355, %v1371
        %v1421 = vcombine.high %v1355, %v1371
        %v1423 = vunpack.c.l.s4 1934713408
        %v1424 = vunpack.c.0.s8 %v1423
        %v1425 = vlaneseq
        %v1426 = vshrl.u32 %v1425, 7
        %v1427 = vsub.s32 %v1424, %v1426
        %v1428 = vrot.slane %v1420, %v1427
        %v1430 = vunpack.c.l.s4 1934713408
        %v1431 = vunpack.c.0.s8 %v1430
        %v1432 = vlaneseq
        %v1433 = vshrl.u32 %v1432, 7
        %v1434 = vsub.s32 %v1431, %v1433
        %v1435 = vrot.slane %v1421, %v1434
        %v1436 = vcombine.low %v1380, %v1412
        %v1437 = vcombine.high %v1380, %v1412
        %v1438 = vcombine.low %v1387, %v1419
        %v1439 = vcombine.high %v1387, %v1419
        %v1440 = vcombine.low %v1396, %v1428
        %v1441 = vcombine.high %v1396, %v1428
        %v1442 = vcombine.low %v1403, %v1435
        %v1443 = vcombine.high %v1403, %v1435
        %v1444 = vcombine.low %v352, %v362
        %v1445 = vcombine.high %v352, %v362
        %v1447 = vunpack.c.l.s4 1983009808
        %v1448 = vunpack.c.0.s8 %v1447
        %v1449 = vlaneseq
        %v1450 = vshrl.u32 %v1449, 7
        %v1451 = vsub.s32 %v1448, %v1450
        %v1452 = vrot.slane %v1444, %v1451
        %v1454 = vunpack.c.l.s4 1983009808
        %v1455 = vunpack.c.0.s8 %v1454
        %v1456 = vlaneseq
        %v1457 = vshrl.u32 %v1456, 7
        %v1458 = vsub.s32 %v1455, %v1457
        %v1459 = vrot.slane %v1445, %v1458
        %v1460 = vcombine.low %v357, %v367
        %v1461 = vcombine.high %v357, %v367
        %v1463 = vunpack.c.l.s4 1983009808
        %v1464 = vunpack.c.0.s8 %v1463
        %v1465 = vlaneseq
        %v1466 = vshrl.u32 %v1465, 7
        %v1467 = vsub.s32 %v1464, %v1466
        %v1468 = vrot.slane %v1460, %v1467
        %v1470 = vunpack.c.l.s4 1983009808
        %v1471 = vunpack.c.0.s8 %v1470
        %v1472 = vlaneseq
        %v1473 = vshrl.u32 %v1472, 7
        %v1474 = vsub.s32 %v1471, %v1473
        %v1475 = vrot.slane %v1461, %v1474
        %v1476 = vcombine.low %v379, %v387
        %v1477 = vcombine.high %v379, %v387
        %v1479 = vunpack.c.l.s4 1983009808
        %v1480 = vunpack.c.0.s8 %v1479
        %v1481 = vlaneseq
        %v1482 = vshrl.u32 %v1481, 7
        %v1483 = vsub.s32 %v1480, %v1482
        %v1484 = vrot.slane %v1476, %v1483
        %v1486 = vunpack.c.l.s4 1983009808
        %v1487 = vunpack.c.0.s8 %v1486
        %v1488 = vlaneseq
        %v1489 = vshrl.u32 %v1488, 7
        %v1490 = vsub.s32 %v1487, %v1489
        %v1491 = vrot.slane %v1477, %v1490
        %v1492 = vcombine.low %v383, %v391
        %v1493 = vcombine.high %v383, %v391
        %v1495 = vunpack.c.l.s4 1983009808
        %v1496 = vunpack.c.0.s8 %v1495
        %v1497 = vlaneseq
        %v1498 = vshrl.u32 %v1497, 7
        %v1499 = vsub.s32 %v1496, %v1498
        %v1500 = vrot.slane %v1492, %v1499
        %v1502 = vunpack.c.l.s4 1983009808
        %v1503 = vunpack.c.0.s8 %v1502
        %v1504 = vlaneseq
        %v1505 = vshrl.u32 %v1504, 7
        %v1506 = vsub.s32 %v1503, %v1505
        %v1507 = vrot.slane %v1493, %v1506
        %v1508 = vcombine.low %v1452, %v1468
        %v1509 = vcombine.high %v1452, %v1468
        %v1511 = vunpack.c.l.s4 1934713408
        %v1512 = vunpack.c.0.s8 %v1511
        %v1513 = vlaneseq
        %v1514 = vshrl.u32 %v1513, 7
        %v1515 = vsub.s32 %v1512, %v1514
        %v1516 = vrot.slane %v1508, %v1515
        %v1518 = vunpack.c.l.s4 1934713408
        %v1519 = vunpack.c.0.s8 %v1518
        %v1520 = vlaneseq
        %v1521 = vshrl.u32 %v1520, 7
        %v1522 = vsub.s32 %v1519, %v1521
        %v1523 = vrot.slane %v1509, %v1522
        %v1524 = vcombine.low %v1459, %v1475
        %v1525 = vcombine.high %v1459, %v1475
        %v1527 = vunpack.c.l.s4 1934713408
        %v1528 = vunpack.c.0.s8 %v1527
        %v1529 = vlaneseq
        %v1530 = vshrl.u32 %v1529, 7
        %v1531 = vsub.s32 %v1528, %v1530
        %v1532 = vrot.slane %v1524, %v1531
        %v1534 = vunpack.c.l.s4 1934713408
        %v1535 = vunpack.c.0.s8 %v1534
        %v1536 = vlaneseq
        %v1537 = vshrl.u32 %v1536, 7
        %v1538 = vsub.s32 %v1535, %v1537
        %v1539 = vrot.slane %v1525, %v1538
        %v1540 = vcombine.low %v1484, %v1500
        %v1541 = vcombine.high %v1484, %v1500
        %v1543 = vunpack.c.l.s4 1934713408
        %v1544 = vunpack.c.0.s8 %v1543
        %v1545 = vlaneseq
        %v1546 = vshrl.u32 %v1545, 7
        %v1547 = vsub.s32 %v1544, %v1546
        %v1548 = vrot.slane %v1540, %v1547
        %v1550 = vunpack.c.l.s4 1934713408
        %v1551 = vunpack.c.0.s8 %v1550
        %v1552 = vlaneseq
        %v1553 = vshrl.u32 %v1552, 7
        %v1554 = vsub.s32 %v1551, %v1553
        %v1555 = vrot.slane %v1541, %v1554
        %v1556 = vcombine.low %v1491, %v1507
        %v1557 = vcombine.high %v1491, %v1507
        %v1559 = vunpack.c.l.s4 1934713408
        %v1560 = vunpack.c.0.s8 %v1559
        %v1561 = vlaneseq
        %v1562 = vshrl.u32 %v1561, 7
        %v1563 = vsub.s32 %v1560, %v1562
        %v1564 = vrot.slane %v1556, %v1563
        %v1566 = vunpack.c.l.s4 1934713408
        %v1567 = vunpack.c.0.s8 %v1566
        %v1568 = vlaneseq
        %v1569 = vshrl.u32 %v1568, 7
        %v1570 = vsub.s32 %v1567, %v1569
        %v1571 = vrot.slane %v1557, %v1570
        %v1572 = vcombine.low %v1516, %v1548
        %v1573 = vcombine.high %v1516, %v1548
        %v1574 = vcombine.low %v1523, %v1555
        %v1575 = vcombine.high %v1523, %v1555
        %v1576 = vcombine.low %v1532, %v1564
        %v1577 = vcombine.high %v1532, %v1564
        %v1578 = vcombine.low %v1539, %v1571
        %v1579 = vcombine.high %v1539, %v1571
        %v1580 = vcombine.low %v403, %v411
        %v1581 = vcombine.high %v403, %v411
        %v1583 = vunpack.c.l.s4 1983009808
        %v1584 = vunpack.c.0.s8 %v1583
        %v1585 = vlaneseq
        %v1586 = vshrl.u32 %v1585, 7
        %v1587 = vsub.s32 %v1584, %v1586
        %v1588 = vrot.slane %v1580, %v1587
        %v1590 = vunpack.c.l.s4 1983009808
        %v1591 = vunpack.c.0.s8 %v1590
        %v1592 = vlaneseq
        %v1593 = vshrl.u32 %v1592, 7
        %v1594 = vsub.s32 %v1591, %v1593
        %v1595 = vrot.slane %v1581, %v1594
        %v1596 = vcombine.low %v407, %v415
        %v1597 = vcombine.high %v407, %v415
        %v1599 = vunpack.c.l.s4 1983009808
        %v1600 = vunpack.c.0.s8 %v1599
        %v1601 = vlaneseq
        %v1602 = vshrl.u32 %v1601, 7
        %v1603 = vsub.s32 %v1600, %v1602
        %v1604 = vrot.slane %v1596, %v1603
        %v1606 = vunpack.c.l.s4 1983009808
        %v1607 = vunpack.c.0.s8 %v1606
        %v1608 = vlaneseq
        %v1609 = vshrl.u32 %v1608, 7
        %v1610 = vsub.s32 %v1607, %v1609
        %v1611 = vrot.slane %v1597, %v1610
        %v1612 = vcombine.low %v1588, %v1604
        %v1613 = vcombine.high %v1588, %v1604
        %v1615 = vunpack.c.l.s4 1934713408
        %v1616 = vunpack.c.0.s8 %v1615
        %v1617 = vlaneseq
        %v1618 = vshrl.u32 %v1617, 7
        %v1619 = vsub.s32 %v1616, %v1618
        %v1620 = vrot.slane %v1612, %v1619
        %v1622 = vunpack.c.l.s4 1934713408
        %v1623 = vunpack.c.0.s8 %v1622
        %v1624 = vlaneseq
        %v1625 = vshrl.u32 %v1624, 7
        %v1626 = vsub.s32 %v1623, %v1625
        %v1627 = vrot.slane %v1613, %v1626
        %v1628 = vcombine.low %v1595, %v1611
        %v1629 = vcombine.high %v1595, %v1611
        %v1631 = vunpack.c.l.s4 1934713408
        %v1632 = vunpack.c.0.s8 %v1631
        %v1633 = vlaneseq
        %v1634 = vshrl.u32 %v1633, 7
        %v1635 = vsub.s32 %v1632, %v1634
        %v1636 = vrot.slane %v1628, %v1635
        %v1638 = vunpack.c.l.s4 1934713408
        %v1639 = vunpack.c.0.s8 %v1638
        %v1640 = vlaneseq
        %v1641 = vshrl.u32 %v1640, 7
        %v1642 = vsub.s32 %v1639, %v1641
        %v1643 = vrot.slane %v1629, %v1642
        %v1644 = vcombine.high %v1620, 0.0
        %v1645 = vcombine.high %v1627, 0.0
        %v1646 = vcombine.high %v1636, 0.0
        %v1647 = vcombine.high %v1643, 0.0
        %1653 = vrot.lane.b32.xlu0 %v553, 16
        %v1654 = vpop.permute.xlu0 %1653
        %1655 = vrot.lane.b32.xlu0 %v689, 16
        %v1656 = vpop.permute.xlu0 %1655
        %1657 = vrot.lane.b32.xlu0 %v825, 16
        %v1658 = vpop.permute.xlu0 %1657
        %1659 = vrot.lane.b32.xlu0 %v961, 16
        %v1660 = vpop.permute.xlu0 %1659
        %1661 = vrot.lane.b32.xlu0 %v1032, 16
        %v1662 = vpop.permute.xlu0 %1661
        %1673 = vrot.lane.b32.xlu0 %v554, 32
        %v1674 = vpop.permute.xlu0 %1673
        %1675 = vrot.lane.b32.xlu0 %v690, 32
        %v1676 = vpop.permute.xlu0 %1675
        %1677 = vrot.lane.b32.xlu0 %v826, 32
        %v1678 = vpop.permute.xlu0 %1677
        %1679 = vrot.lane.b32.xlu0 %v962, 32
        %v1680 = vpop.permute.xlu0 %1679
        %1681 = vrot.lane.b32.xlu0 %v1015, 32
        %v1682 = vpop.permute.xlu0 %1681
        %1693 = vrot.lane.b32.xlu0 %v555, 48
        %v1694 = vpop.permute.xlu0 %1693
        %1695 = vrot.lane.b32.xlu0 %v691, 48
        %v1696 = vpop.permute.xlu0 %1695
        %1697 = vrot.lane.b32.xlu0 %v827, 48
        %v1698 = vpop.permute.xlu0 %1697
        %1699 = vrot.lane.b32.xlu0 %v963, 48
        %v1700 = vpop.permute.xlu0 %1699
        %1701 = vrot.lane.b32.xlu0 %v1033, 48
        %v1702 = vpop.permute.xlu0 %1701
        %1713 = vrot.lane.b32.xlu0 %v556, 64
        %v1714 = vpop.permute.xlu0 %1713
        %1715 = vrot.lane.b32.xlu0 %v692, 64
        %v1716 = vpop.permute.xlu0 %1715
        %1717 = vrot.lane.b32.xlu0 %v828, 64
        %v1718 = vpop.permute.xlu0 %1717
        %1719 = vrot.lane.b32.xlu0 %v964, 64
        %v1720 = vpop.permute.xlu0 %1719
        %1721 = vrot.lane.b32.xlu0 %v1024, 64
        %v1722 = vpop.permute.xlu0 %1721
        %1733 = vrot.lane.b32.xlu0 %v557, 80
        %v1734 = vpop.permute.xlu0 %1733
        %1735 = vrot.lane.b32.xlu0 %v693, 80
        %v1736 = vpop.permute.xlu0 %1735
        %1737 = vrot.lane.b32.xlu0 %v829, 80
        %v1738 = vpop.permute.xlu0 %1737
        %1739 = vrot.lane.b32.xlu0 %v965, 80
        %v1740 = vpop.permute.xlu0 %1739
        %1741 = vrot.lane.b32.xlu0 %v1034, 80
        %v1742 = vpop.permute.xlu0 %1741
        %1753 = vrot.lane.b32.xlu0 %v558, 96
        %v1754 = vpop.permute.xlu0 %1753
        %1755 = vrot.lane.b32.xlu0 %v694, 96
        %v1756 = vpop.permute.xlu0 %1755
        %1757 = vrot.lane.b32.xlu0 %v830, 96
        %v1758 = vpop.permute.xlu0 %1757
        %1759 = vrot.lane.b32.xlu0 %v966, 96
        %v1760 = vpop.permute.xlu0 %1759
        %1761 = vrot.lane.b32.xlu0 %v1031, 96
        %v1762 = vpop.permute.xlu0 %1761
        %1773 = vrot.lane.b32.xlu0 %v559, 112
        %v1774 = vpop.permute.xlu0 %1773
        %1775 = vrot.lane.b32.xlu0 %v695, 112
        %v1776 = vpop.permute.xlu0 %1775
        %1777 = vrot.lane.b32.xlu0 %v831, 112
        %v1778 = vpop.permute.xlu0 %1777
        %1779 = vrot.lane.b32.xlu0 %v967, 112
        %v1780 = vpop.permute.xlu0 %1779
        %1781 = vrot.lane.b32.xlu0 %v1035, 112
        %v1782 = vpop.permute.xlu0 %1781
        %1793 = vrot.lane.b32.xlu0 %v1165, 16
        %v1794 = vpop.permute.xlu0 %1793
        %1795 = vrot.lane.b32.xlu0 %v1301, 16
        %v1796 = vpop.permute.xlu0 %1795
        %1797 = vrot.lane.b32.xlu0 %v1437, 16
        %v1798 = vpop.permute.xlu0 %1797
        %1799 = vrot.lane.b32.xlu0 %v1573, 16
        %v1800 = vpop.permute.xlu0 %1799
        %1801 = vrot.lane.b32.xlu0 %v1644, 16
        %v1802 = vpop.permute.xlu0 %1801
        %1813 = vrot.lane.b32.xlu0 %v1166, 32
        %v1814 = vpop.permute.xlu0 %1813
        %1815 = vrot.lane.b32.xlu0 %v1302, 32
        %v1816 = vpop.permute.xlu0 %1815
        %1817 = vrot.lane.b32.xlu0 %v1438, 32
        %v1818 = vpop.permute.xlu0 %1817
        %1819 = vrot.lane.b32.xlu0 %v1574, 32
        %v1820 = vpop.permute.xlu0 %1819
        %1821 = vrot.lane.b32.xlu0 %v1627, 32
        %v1822 = vpop.permute.xlu0 %1821
        %1833 = vrot.lane.b32.xlu0 %v1167, 48
        %v1834 = vpop.permute.xlu0 %1833
        %1835 = vrot.lane.b32.xlu0 %v1303, 48
        %v1836 = vpop.permute.xlu0 %1835
        %1837 = vrot.lane.b32.xlu0 %v1439, 48
        %v1838 = vpop.permute.xlu0 %1837
        %1839 = vrot.lane.b32.xlu0 %v1575, 48
        %v1840 = vpop.permute.xlu0 %1839
        %1841 = vrot.lane.b32.xlu0 %v1645, 48
        %v1842 = vpop.permute.xlu0 %1841
        %1853 = vrot.lane.b32.xlu0 %v1168, 64
        %v1854 = vpop.permute.xlu0 %1853
        %1855 = vrot.lane.b32.xlu0 %v1304, 64
        %v1856 = vpop.permute.xlu0 %1855
        %1857 = vrot.lane.b32.xlu0 %v1440, 64
        %v1858 = vpop.permute.xlu0 %1857
        %1859 = vrot.lane.b32.xlu0 %v1576, 64
        %v1860 = vpop.permute.xlu0 %1859
        %1861 = vrot.lane.b32.xlu0 %v1636, 64
        %v1862 = vpop.permute.xlu0 %1861
        %1873 = vrot.lane.b32.xlu0 %v1169, 80
        %v1874 = vpop.permute.xlu0 %1873
        %1875 = vrot.lane.b32.xlu0 %v1305, 80
        %v1876 = vpop.permute.xlu0 %1875
        %1877 = vrot.lane.b32.xlu0 %v1441, 80
        %v1878 = vpop.permute.xlu0 %1877
        %1879 = vrot.lane.b32.xlu0 %v1577, 80
        %v1880 = vpop.permute.xlu0 %1879
        %1881 = vrot.lane.b32.xlu0 %v1646, 80
        %v1882 = vpop.permute.xlu0 %1881
        %1893 = vrot.lane.b32.xlu0 %v1170, 96
        %v1894 = vpop.permute.xlu0 %1893
        %1895 = vrot.lane.b32.xlu0 %v1306, 96
        %v1896 = vpop.permute.xlu0 %1895
        %1897 = vrot.lane.b32.xlu0 %v1442, 96
        %v1898 = vpop.permute.xlu0 %1897
        %1899 = vrot.lane.b32.xlu0 %v1578, 96
        %v1900 = vpop.permute.xlu0 %1899
        %1901 = vrot.lane.b32.xlu0 %v1643, 96
        %v1902 = vpop.permute.xlu0 %1901
        %1913 = vrot.lane.b32.xlu0 %v1171, 112
        %v1914 = vpop.permute.xlu0 %1913
        %1915 = vrot.lane.b32.xlu0 %v1307, 112
        %v1916 = vpop.permute.xlu0 %1915
        %1917 = vrot.lane.b32.xlu0 %v1443, 112
        %v1918 = vpop.permute.xlu0 %1917
        %1919 = vrot.lane.b32.xlu0 %v1579, 112
        %v1920 = vpop.permute.xlu0 %1919
        %1921 = vrot.lane.b32.xlu0 %v1647, 112
        %v1922 = vpop.permute.xlu0 %1921
        %vm1928 = vcmask 130048
        %v1929 = vsel %vm1928, %v552, %v1654
        %v1930 = vsel %vm1928, %v688, %v1656
        %v1931 = vsel %vm1928, %v824, %v1658
        %v1932 = vsel %vm1928, %v960, %v1660
        %v1933 = vsel %vm1928, %v1008, %v1662
        %vm1934 = vcmask 261120
        %v1935 = vsel %vm1934, %v1929, %v1674
        %v1936 = vsel %vm1934, %v1930, %v1676
        %v1937 = vsel %vm1934, %v1931, %v1678
        %v1938 = vsel %vm1934, %v1932, %v1680
        %v1939 = vsel %vm1934, %v1933, %v1682
        %vm1940 = vcmask 392192
        %v1941 = vsel %vm1940, %v1935, %v1694
        %v1942 = vsel %vm1940, %v1936, %v1696
        %v1943 = vsel %vm1940, %v1937, %v1698
        %v1944 = vsel %vm1940, %v1938, %v1700
        %v1945 = vsel %vm1940, %v1939, %v1702
        %vm1946 = vcmask 523264
        %v1947 = vsel %vm1946, %v1941, %v1714
        %v1948 = vsel %vm1946, %v1942, %v1716
        %v1949 = vsel %vm1946, %v1943, %v1718
        %v1950 = vsel %vm1946, %v1944, %v1720
        %v1951 = vsel %vm1946, %v1945, %v1722
        %vm1952 = vcmask 654336
        %v1953 = vsel %vm1952, %v1947, %v1734
        %v1954 = vsel %vm1952, %v1948, %v1736
        %v1955 = vsel %vm1952, %v1949, %v1738
        %v1956 = vsel %vm1952, %v1950, %v1740
        %v1957 = vsel %vm1952, %v1951, %v1742
        %vm1958 = vcmask 785408
        %v1959 = vsel %vm1958, %v1953, %v1754
        %v1960 = vsel %vm1958, %v1954, %v1756
        %v1961 = vsel %vm1958, %v1955, %v1758
        %v1962 = vsel %vm1958, %v1956, %v1760
        %v1963 = vsel %vm1958, %v1957, %v1762
        %vm1964 = vcmask 916480
        %v1965 = vsel %vm1964, %v1959, %v1774
        %v1966 = vsel %vm1964, %v1960, %v1776
        %v1967 = vsel %vm1964, %v1961, %v1778
        %v1968 = vsel %vm1964, %v1962, %v1780
        %v1969 = vsel %vm1964, %v1963, %v1782
        %v1970 = vsel %vm1928, %v1164, %v1794
        %v1971 = vsel %vm1928, %v1300, %v1796
        %v1972 = vsel %vm1928, %v1436, %v1798
        %v1973 = vsel %vm1928, %v1572, %v1800
        %v1974 = vsel %vm1928, %v1620, %v1802
        %v1975 = vsel %vm1934, %v1970, %v1814
        %v1976 = vsel %vm1934, %v1971, %v1816
        %v1977 = vsel %vm1934, %v1972, %v1818
        %v1978 = vsel %vm1934, %v1973, %v1820
        %v1979 = vsel %vm1934, %v1974, %v1822
        %v1980 = vsel %vm1940, %v1975, %v1834
        %v1981 = vsel %vm1940, %v1976, %v1836
        %v1982 = vsel %vm1940, %v1977, %v1838
        %v1983 = vsel %vm1940, %v1978, %v1840
        %v1984 = vsel %vm1940, %v1979, %v1842
        %v1985 = vsel %vm1946, %v1980, %v1854
        %v1986 = vsel %vm1946, %v1981, %v1856
        %v1987 = vsel %vm1946, %v1982, %v1858
        %v1988 = vsel %vm1946, %v1983, %v1860
        %v1989 = vsel %vm1946, %v1984, %v1862
        %v1990 = vsel %vm1952, %v1985, %v1874
        %v1991 = vsel %vm1952, %v1986, %v1876
        %v1992 = vsel %vm1952, %v1987, %v1878
        %v1993 = vsel %vm1952, %v1988, %v1880
        %v1994 = vsel %vm1952, %v1989, %v1882
        %v1995 = vsel %vm1958, %v1990, %v1894
        %v1996 = vsel %vm1958, %v1991, %v1896
        %v1997 = vsel %vm1958, %v1992, %v1898
        %v1998 = vsel %vm1958, %v1993, %v1900
        %v1999 = vsel %vm1958, %v1994, %v1902
        %v2000 = vsel %vm1964, %v1995, %v1914
        %v2001 = vsel %vm1964, %v1996, %v1916
        %v2002 = vsel %vm1964, %v1997, %v1918
        %v2003 = vsel %vm1964, %v1998, %v1920
        %v2004 = vsel %vm1964, %v1999, %v1922
        %v2005 = vld [vmem:[%s1] sm:$0xff]
        %v2006 = vld [vmem:[%s2] sm:$0xff]
        %2008 = vset.pattern.permute.xlu0 0
        %2009 = vperm.xlu0 %2008, %v2006
        %v2010 = vpop.permute.xlu0 %2009
        %vm2012 = vcmask 293888
        %v2014 = vsel %vm2012, %v2005, 0
        %vm2016 = vcmask 1043456
        %v2018 = vsel %vm2016, %v1969, 0
        %v2021 = vsel %vm2016, %v2004, 0
        %2023 = vmatprep.subr.mxu0 %v2000
        %2024 = vmatpush1.msra.mxu0 %v1965
        %2025 = vmatprep.subr.mxu0 %v2001
        %2026 = vmatpush1.msra.mxu0 %v1966
        %2027 = vmatprep.subr.mxu0 %v2002
        %2028 = vmatpush1.msra.mxu0 %v1967
        %2029 = vmatprep.subr.mxu0 %v2003
        %2030 = vmatpush1.msra.mxu0 %v1968
        %2031 = vmatprep.subr.mxu0 %v2021
        %2032 = vmatpush1.msra.mxu0 %v2018
        %2033 = vmatprep.subr.mxu0 0.0
        %2034 = vmatpush1.msra.mxu0 0.0
        %2035 = vmatprep.subr.mxu0 0.0
        %2036 = vmatpush1.msra.mxu0 0.0
        %2037 = vmatprep.subr.mxu0 0.0
        %2038 = vmatpush1.msra.mxu0 0.0
        %2039 = vmatprep.subr.mxu0 0.0
        %2040 = vmatpush1.msra.mxu0 0.0
        %2041 = vmatprep.subr.mxu0 0.0
        %2042 = vmatpush1.msra.mxu0 0.0
        %2043 = vmatprep.subr.mxu0 0.0
        %2044 = vmatpush1.msra.mxu0 0.0
        %2045 = vmatprep.subr.mxu0 0.0
        %2046 = vmatpush1.msra.mxu0 0.0
        %2047 = vmatprep.subr.mxu0 0.0
        %2048 = vmatpush1.msra.mxu0 0.0
        %2049 = vmatprep.subr.mxu0 0.0
        %2050 = vmatpush1.msra.mxu0 0.0
        %2051 = vmatprep.subr.mxu0 0.0
        %2052 = vmatpush1.msra.mxu0 0.0
        %2053 = vmatprep.subr.mxu0 0.0
        %2054 = vmatpush1.msra.mxu0 0.0
        %2055 = vmatprep.subr.mxu0 0.0
        %2056 = vmatpush1.msra.mxu0 0.0
        %2057 = vmatprep.subr.mxu0 0.0
        %2058 = vmatpush1.msra.mxu0 0.0
        %2059 = vmatprep.subr.mxu0 0.0
        %2060 = vmatpush1.msra.mxu0 0.0
        %2061 = vmatprep.subr.mxu0 0.0
        %2062 = vmatpush1.msra.mxu0 0.0
        %2063 = vmatprep.subr.mxu0 0.0
        %2064 = vmatpush1.msra.mxu0 0.0
        %2065 = vmatprep.subr.mxu0 0.0
        %2066 = vmatpush1.msra.mxu0 0.0
        %2067 = vmatprep.subr.mxu0 0.0
        %2068 = vmatpush1.msra.mxu0 0.0
        %2069 = vmatprep.subr.mxu0 0.0
        %2070 = vmatpush1.msra.mxu0 0.0
        %2071 = vmatprep.subr.mxu0 0.0
        %2072 = vmatpush1.msra.mxu0 0.0
        %2073 = vmatprep.subr.mxu0 0.0
        %2074 = vmatpush1.msra.mxu0 0.0
        %2075 = vmatprep.subr.mxu0 0.0
        %2076 = vmatpush1.msra.mxu0 0.0
        %2077 = vmatprep.subr.mxu0 0.0
        %2078 = vmatpush1.msra.mxu0 0.0
        %2079 = vmatprep.subr.mxu0 0.0
        %2080 = vmatpush1.msra.mxu0 0.0
        %2081 = vmatprep.subr.mxu0 0.0
        %2082 = vmatpush1.msra.mxu0 0.0
        %2083 = vmatprep.subr.mxu0 0.0
        %2084 = vmatpush1.msra.mxu0 0.0
        %2085 = vmatprep.subr.mxu0 0.0
        %2086 = vmatpush1.msra.mxu0 0.0
        %2087 = vmatprep.mubr.f32.mxu0 0.0
        %2088 = vmatmul.mubr.f32.gmra.mrb[0].mxu0 %v2014
        %v2089 = vpop.f32.mrb[0].mxu0
        %v2090 = vadd.f32 %v2010, %v2089
        %v2091 = vpop.f32.mrb[0].mxu0
        %v2092 = vadd.f32 %v2010, %v2091
        %2093 = vdwg.mxu0
        %v2094 = vxor.u32 %v2090, 2147483648
        %v2095 = vxor.u32 %v2092, 2147483648
        %v2096 = vmul.f32 %v2094, 1.442695
        %v2097 = vpow.pop %v2096
        %v2098 = vmul.f32 %v2095, 1.442695
        %v2099 = vpow.pop %v2098
        %v2100 = vadd.f32 %v2097, 1.0
        %v2101 = vadd.f32 %v2099, 1.0
        %v2102 = vrcp.pop %v2100
        %v2103 = vmul.f32 1.0, %v2102
        %v2104 = vrcp.pop %v2101
        %v2105 = vmul.f32 1.0, %v2104
        %v2106 = vmul.f32 %v2090, %v2103
        %v2107 = vmul.f32 %v2092, %v2105
        %2108 = vst [vmem:[%s187] sm:$0xff] %v2106
        %2109 = vst [vmem:[%s187 + $0x8] sm:$0xff] %v2107
        %s2110 = sand.u32 %s109, 1
        %s2111 = scalar_lea.sflag [#allocation3], %s2110
        %s2112 = sand.u32 %s109, 1
        %s2113 = smul.addr %s2112, 16
        %s2114 = scalar_lea.vmem [#allocation2], %s2113
        // Predicated region
        $region33: #{tpu_custom_call.1} parent=31 // pred_check
          %p2115 = pneg %p119
        $region34: #{tpu_custom_call.1} parent=31 // pred_check_branch
          %2117 = sbr.rel (%p2115) target = $region36
        $region35: #{tpu_custom_call.1} parent=31 // pred_region
          %s2118 = smul.u32 2, %s22
          %s2120 = ssub.s32 256, 256
          %2121 = vsyncadd %s2111, %s2120
          %s2122 = smul.addr %s21, 2
          %s2123 = sadd.s32 %s2118, %s2122
          %s2124 = smul.addr %s2123, 128
          %s2125 = scalar_lea.hbm %s3, %s2124
          %s2127 = sshll.u32 %s2114, 4
          %s2128 = int_to_ptr.vmem [resolvable:$true] %s2127
          %2130 = dma.vmem_to_hbm [thread:$0]  %s2128, 256, %s2125, %s2111
        $region36: #{tpu_custom_call.1} parent=31 // pred_fallthru
          _
      $region32: #{tpu_custom_call.1} parent=5 // pred_fallthru
        _
      %p2131 = scmp.le.s32.totalorder 2, %s12
      // Predicated region
      $region37: #{tpu_custom_call.1} parent=5 // pred_check
        %p2132 = pneg %p2131
      $region38: #{tpu_custom_call.1} parent=5 // pred_check_branch
        %2134 = sbr.rel (%p2132) target = $region40
      $region39: #{tpu_custom_call.1} parent=5 // pred_region
        %s2135 = ssub.s32 %s12, 2
        // Predicated region
        $region41: #{tpu_custom_call.1} parent=39 // pred_check
          %p2136 = pneg %p125
        $region42: #{tpu_custom_call.1} parent=39 // pred_check_branch
          %2138 = sbr.rel (%p2136) target = $region44
        $region43: #{tpu_custom_call.1} parent=39 // pred_region
          %s2139 = sand.u32 %s110, 1
          %s2140 = scalar_lea.sflag [#allocation3], %s2139
          %s2141 = sand.u32 %s110, 1
          %s2142 = smul.addr %s2141, 16
          %s2143 = scalar_lea.vmem [#allocation2], %s2142
          %2144 = dma.done %s2140, 256
        $region44: #{tpu_custom_call.1} parent=39 // pred_fallthru
          _
      $region40: #{tpu_custom_call.1} parent=5 // pred_fallthru
        _
    $region6: #{tpu_custom_call.1} parent=1 // loop_footer
      %s16 = sadd.s32 1, %s12
    $region7: #{tpu_custom_call.1} parent=1 // loop_footer_branch
      %11 = sbr.rel target = $region3
    $region8: #{tpu_custom_call.1} parent=1 // loop_exit
      _
    %2145 = vsyncpa [#allocation3], 1
    %s2146 = scalar_lea.sflag [#allocation3], 1
    %2147 = vsyncpa %s2146, 1

</llo_original>
